<compile_context>
chip_gen: v6e
topology: v6e:2x2x1
jax: 0.10.0
libtpu: 0.0.40
codegen_flags: <defaults>
</compile_context>

<pallas_src>
import functools

import jax
import jax.numpy as jnp
from jax.experimental import pallas as pl
from jax.experimental.pallas import tpu as pltpu

HIDDEN = 32


# ----------------------------------------------------------------------------
# Fused Pallas kernel:  softplus(conv2(softplus(conv1(x))))  per batch image
# ----------------------------------------------------------------------------
def _fused_conv_kernel(x_ref, w1_ref, w2_ref, b1_ref, b2_ref, o_ref, h1p_ref,
                       *, H, W, PAD):
    HW = H * W
    L = HW + 2 * PAD
    C1 = w1_ref.shape[1]
    C2 = w2_ref.shape[1]
    f32 = jnp.float32

    # Lane masks for horizontal (width) wrap of the flattened pixel axis.
    col = jax.lax.broadcasted_iota(jnp.int32, (1, HW), 1) % W
    keep_left = col != 0           # tap at w-1 is invalid for w == 0
    keep_right = col != (W - 1)    # tap at w+1 is invalid for w == W-1

    def conv3x3_softplus(src, w_ref, b_ref, cout):
        # src: (cin, L) bf16, zero-padded by PAD on both ends of the pixel axis
        acc = jnp.zeros((cout, HW), f32)
        for kh in range(3):
            for kw in range(3):
                k = kh * 3 + kw
                s = PAD + (kh - 1) * W + (kw - 1)
                patch = src[:, s:s + HW]                        # (cin, HW) bf16
                contrib = jnp.dot(w_ref[k], patch,
                                  preferred_element_type=f32)   # (cout, HW) f32
                if kw == 0:
                    contrib = jnp.where(keep_left, contrib, 0.0)
                elif kw == 2:
                    contrib = jnp.where(keep_right, contrib, 0.0)
                acc = acc + contrib
        acc = acc + b_ref[...]                                  # (cout,1) bcast
        # softplus, matching torch.nn.functional.softplus (beta=1, threshold=20)
        return jnp.where(acc > 20.0, acc, jnp.log1p(jnp.exp(acc)))

    # conv1 + softplus (f32 result)
    x_t = x_ref[0]                                              # (Cin, L) bf16
    h1 = conv3x3_softplus(x_t, w1_ref, b1_ref, C1)              # (C1, HW) f32

    # stash zero-padded h1 in VMEM scratch only (never written to HBM)
    h1p_ref[...] = jnp.zeros((C1, L), jnp.bfloat16)
    h1p_ref[:, PAD:PAD + HW] = h1.astype(jnp.bfloat16)

    # conv2 + softplus
    h2 = conv3x3_softplus(h1p_ref[...], w2_ref, b2_ref, C2)     # (C2, HW) f32
    o_ref[0] = h2.astype(o_ref.dtype)


def fused_double_conv(x_nchw, w1, b1, w2, b2):
    """Two fused 3x3/pad=1 convs with softplus.

    Returns a (N, Cout2, H*W) float32 slab; reshaping to (N, Cout2*H*W) gives
    exactly PyTorch's NCHW flatten order.
    """
    N, Cin, H, W = x_nchw.shape
    HW = H * W
    PAD = ((W + 1 + 127) // 128) * 128       # lane-aligned zero pad >= W+1
    L = HW + 2 * PAD
    C1, C2 = w1.shape[0], w2.shape[0]

    # NCHW is already channel-major: flatten spatial dims and zero-pad lanes.
    x_flat = x_nchw.reshape(N, Cin, HW).astype(jnp.bfloat16)
    x_pad = jnp.pad(x_flat, ((0, 0), (0, 0), (PAD, PAD)))

    # Conv weights (Cout, Cin, 3, 3) -> (9, Cout, Cin), tap index k = kh*3+kw.
    w1_k = jnp.transpose(w1, (2, 3, 0, 1)).reshape(9, C1, Cin).astype(jnp.bfloat16)
    w2_k = jnp.transpose(w2, (2, 3, 0, 1)).reshape(9, C2, C1).astype(jnp.bfloat16)
    b1_c = b1.reshape(C1, 1).astype(jnp.float32)
    b2_c = b2.reshape(C2, 1).astype(jnp.float32)

    kernel = functools.partial(_fused_conv_kernel, H=H, W=W, PAD=PAD)
    return pl.pallas_call(
        kernel,
        out_shape=jax.ShapeDtypeStruct((N, C2, HW), jnp.float32),
        grid_spec=pltpu.PrefetchScalarGridSpec(
            num_scalar_prefetch=0,
            grid=(N,),
            in_specs=[
                pl.BlockSpec((1, Cin, L), lambda i: (i, 0, 0)),   # one image
                pl.BlockSpec((9, C1, Cin), lambda i: (0, 0, 0)),  # conv1 weights
                pl.BlockSpec((9, C2, C1), lambda i: (0, 0, 0)),   # conv2 weights
                pl.BlockSpec((C1, 1), lambda i: (0, 0)),          # bias1
                pl.BlockSpec((C2, 1), lambda i: (0, 0)),          # bias2
            ],
            out_specs=pl.BlockSpec((1, C2, HW), lambda i: (i, 0, 0)),
            scratch_shapes=[pltpu.VMEM((C1, L), jnp.bfloat16)],   # padded h1
        ),
        compiler_params=pltpu.CompilerParams(
            dimension_semantics=("parallel",),
        ),
    )(x_pad, w1_k, w2_k, b1_c, b2_c)


# ----------------------------------------------------------------------------
# Parameter init (deterministic, synthetic)
# ----------------------------------------------------------------------------
def init_params(key, channel_size, output_size, spatial, heads_number=1):
    ks = jax.random.split(key, 4 + 2 * heads_number)
    s1 = 1.0 / jnp.sqrt(channel_size * 9.0)
    s2 = 1.0 / jnp.sqrt(HIDDEN * 9.0)
    feat = HIDDEN * spatial * spatial
    s3 = 1.0 / jnp.sqrt(float(feat))
    params = {
        "w1": jax.random.uniform(ks[0], (HIDDEN, channel_size, 3, 3),
                                 jnp.float32, -s1, s1),
        "b1": jax.random.uniform(ks[1], (HIDDEN,), jnp.float32, -s1, s1),
        "w2": jax.random.uniform(ks[2], (HIDDEN, HIDDEN, 3, 3),
                                 jnp.float32, -s2, s2),
        "b2": jax.random.uniform(ks[3], (HIDDEN,), jnp.float32, -s2, s2),
        "heads": [],
    }
    # Head weights stored as (in_features, out_features); rows ordered in the
    # PyTorch NCHW flatten order (c, h, w).  Real checkpoints would need a
    # transpose of nn.Linear's (out, in) weight.
    for h in range(heads_number):
        wh = jax.random.uniform(ks[4 + 2 * h], (feat, output_size),
                                jnp.float32, -s3, s3)
        bh = jax.random.uniform(ks[5 + 2 * h], (output_size,),
                                jnp.float32, -s3, s3)
        params["heads"].append((wh, bh))
    return params


# ----------------------------------------------------------------------------
# Forward pass (== Regularized_model_idr.forward -> Model_conv_idr.forward)
# ----------------------------------------------------------------------------
def regularized_model_idr_forward(params, x_nchw, task=0):
    x = x_nchw.astype(jnp.float32)
    n = x.shape[0]

    feats = fused_double_conv(x, params["w1"], params["b1"],
                              params["w2"], params["b2"])   # (N, 32, H*W)
    # (N, 32, H*W) -> (N, 32*H*W): exactly PyTorch's NCHW flatten order, no
    # runtime activation transpose needed.
    feat = feats.reshape(n, -1)

    # Tiny task head stays in XLA (per perf review: a separate pallas_call
    # launch + weight DMA would dominate at batch=2).
    wh, bh = params["heads"][task]
    return jnp.dot(feat, wh) + bh


# ----------------------------------------------------------------------------
if __name__ == "__main__":
    batch, channel_size, spatial = 2, 4, 16
    output_size, heads_number = 10, 1

    key = jax.random.PRNGKey(0)
    k_params, k_x = jax.random.split(key)
    params = init_params(k_params, channel_size, output_size, spatial,
                         heads_number)
    x = jax.random.normal(k_x, (batch, channel_size, spatial, spatial),
                          jnp.float32)

    fwd = jax.jit(regularized_model_idr_forward, static_argnums=(2,))
    out = fwd(params, x, 0)
    jax.block_until_ready(out)
    assert out.shape == (batch, output_size)
    print("KERNEL_OK")
</pallas_src>

<mosaic_0001>
module attributes {stable_mosaic.version = 11 : i64} {
  func.func @_fused_conv_kernel(%arg0: i32, %arg1: memref<1x4x512xbf16, #tpu.memory_space<vmem>>, %arg2: memref<9x32x4xbf16, #tpu.memory_space<vmem>>, %arg3: memref<9x32x32xbf16, #tpu.memory_space<vmem>>, %arg4: memref<32x1xf32, #tpu.memory_space<vmem>>, %arg5: memref<32x1xf32, #tpu.memory_space<vmem>>, %arg6: memref<1x32x256xf32, #tpu.memory_space<vmem>>, %arg7: memref<32x512xbf16, #tpu.memory_space<vmem>>) attributes {dimension_semantics = [#tpu.dimension_semantics<parallel>], iteration_bounds = array<i64: 2>, scalar_prefetch = 0 : i64, scratch_operands = 1 : i64, tpu.core_type = #tpu.core_type<tc>, window_params = [{transform_indices = @transform_0, window_bounds = array<i64: 1, 4, 512>}, {pipeline_mode = #tpu.pipeline_mode<synchronous>, transform_indices = @transform_1, window_bounds = array<i64: 9, 32, 4>}, {pipeline_mode = #tpu.pipeline_mode<synchronous>, transform_indices = @transform_2, window_bounds = array<i64: 9, 32, 32>}, {pipeline_mode = #tpu.pipeline_mode<synchronous>, transform_indices = @transform_3, window_bounds = array<i64: 32, 1>}, {pipeline_mode = #tpu.pipeline_mode<synchronous>, transform_indices = @transform_4, window_bounds = array<i64: 32, 1>}, {transform_indices = @transform_5, window_bounds = array<i64: 1, 32, 256>}]} {
    %0 = tpu.iota {dimensions = array<i32: 1>} : vector<1x256xi32>
    %c16_i32 = arith.constant 16 : i32
    %c0_i32 = arith.constant 0 : i32
    %1 = arith.cmpi eq, %c16_i32, %c0_i32 : i32
    %c1_i32 = arith.constant 1 : i32
    %2 = arith.select %1, %c1_i32, %c16_i32 : i32
    %3 = vector.broadcast %2 : i32 to vector<1x256xi32>
    %4 = arith.remsi %0, %3 : vector<1x256xi32>
    %c0_i32_0 = arith.constant 0 : i32
    %5 = vector.broadcast %c0_i32_0 : i32 to vector<1x256xi32>
    %6 = arith.cmpi ne, %4, %5 : vector<1x256xi32>
    %c0_i32_1 = arith.constant 0 : i32
    %7 = vector.broadcast %c0_i32_1 : i32 to vector<1x256xi32>
    %8 = arith.cmpi slt, %4, %7 : vector<1x256xi32>
    %c0_i32_2 = arith.constant 0 : i32
    %9 = arith.cmpi slt, %2, %c0_i32_2 : i32
    %10 = vector.broadcast %9 : i1 to vector<1x256xi1>
    %11 = vector.broadcast %10 : vector<1x256xi1> to vector<1x256xi1>
    %12 = arith.xori %8, %11 : vector<1x256xi1>
    %13 = arith.andi %12, %6 : vector<1x256xi1>
    %14 = vector.broadcast %2 : i32 to vector<1x256xi32>
    %15 = arith.addi %4, %14 : vector<1x256xi32>
    %16 = arith.select %13, %15, %4 : vector<1x256xi1>, vector<1x256xi32>
    %c0_i32_3 = arith.constant 0 : i32
    %17 = vector.broadcast %c0_i32_3 : i32 to vector<1x256xi32>
    %18 = arith.cmpi ne, %16, %17 : vector<1x256xi32>
    %c15_i32 = arith.constant 15 : i32
    %19 = vector.broadcast %c15_i32 : i32 to vector<1x256xi32>
    %20 = arith.cmpi ne, %16, %19 : vector<1x256xi32>
    %c0 = arith.constant 0 : index
    %c0_4 = arith.constant 0 : index
    %c0_5 = arith.constant 0 : index
    %21 = vector.load %arg1[%c0, %c0_4, %c0_5] : memref<1x4x512xbf16, #tpu.memory_space<vmem>>, vector<1x4x512xbf16>
    %22 = vector.shape_cast %21 : vector<1x4x512xbf16> to vector<4x512xbf16>
    %cst = arith.constant 0.000000e+00 : f32
    %23 = vector.broadcast %cst : f32 to vector<32x256xf32>
    %24 = vector.extract_strided_slice %22 {offsets = [0, 111], sizes = [4, 256], strides = [1, 1]} : vector<4x512xbf16> to vector<4x256xbf16>
    %c0_6 = arith.constant 0 : index
    %c0_7 = arith.constant 0 : index
    %c0_8 = arith.constant 0 : index
    %25 = vector.load %arg2[%c0_6, %c0_7, %c0_8] : memref<9x32x4xbf16, #tpu.memory_space<vmem>>, vector<1x32x4xbf16>
    %26 = vector.shape_cast %25 : vector<1x32x4xbf16> to vector<32x4xbf16>
    %cst_9 = arith.constant dense<0.000000e+00> : vector<32x256xf32>
    %27 = tpu.matmul %26, %24, %cst_9 {dimension_numbers = #tpu.dot_dimension_numbers<[1], [0], [0], [1], [0, 0, 1, 1], [], []>} : vector<32x4xbf16>, vector<4x256xbf16>, vector<32x256xf32> -> vector<32x256xf32>
    %cst_10 = arith.constant 0.000000e+00 : f32
    %28 = vector.shape_cast %18 : vector<1x256xi1> to vector<1x256xi1>
    %29 = vector.broadcast %28 : vector<1x256xi1> to vector<32x256xi1>
    %30 = vector.broadcast %cst_10 : f32 to vector<32x256xf32>
    %31 = arith.select %29, %27, %30 : vector<32x256xi1>, vector<32x256xf32>
    %32 = arith.addf %23, %31 : vector<32x256xf32>
    %33 = vector.extract_strided_slice %22 {offsets = [0, 112], sizes = [4, 256], strides = [1, 1]} : vector<4x512xbf16> to vector<4x256xbf16>
    %c1 = arith.constant 1 : index
    %c0_11 = arith.constant 0 : index
    %c0_12 = arith.constant 0 : index
    %34 = vector.load %arg2[%c1, %c0_11, %c0_12] : memref<9x32x4xbf16, #tpu.memory_space<vmem>>, vector<1x32x4xbf16>
    %35 = vector.shape_cast %34 : vector<1x32x4xbf16> to vector<32x4xbf16>
    %cst_13 = arith.constant dense<0.000000e+00> : vector<32x256xf32>
    %36 = tpu.matmul %35, %33, %cst_13 {dimension_numbers = #tpu.dot_dimension_numbers<[1], [0], [0], [1], [0, 0, 1, 1], [], []>} : vector<32x4xbf16>, vector<4x256xbf16>, vector<32x256xf32> -> vector<32x256xf32>
    %37 = arith.addf %32, %36 : vector<32x256xf32>
    %38 = vector.extract_strided_slice %22 {offsets = [0, 113], sizes = [4, 256], strides = [1, 1]} : vector<4x512xbf16> to vector<4x256xbf16>
    %c2 = arith.constant 2 : index
    %c0_14 = arith.constant 0 : index
    %c0_15 = arith.constant 0 : index
    %39 = vector.load %arg2[%c2, %c0_14, %c0_15] : memref<9x32x4xbf16, #tpu.memory_space<vmem>>, vector<1x32x4xbf16>
    %40 = vector.shape_cast %39 : vector<1x32x4xbf16> to vector<32x4xbf16>
    %cst_16 = arith.constant dense<0.000000e+00> : vector<32x256xf32>
    %41 = tpu.matmul %40, %38, %cst_16 {dimension_numbers = #tpu.dot_dimension_numbers<[1], [0], [0], [1], [0, 0, 1, 1], [], []>} : vector<32x4xbf16>, vector<4x256xbf16>, vector<32x256xf32> -> vector<32x256xf32>
    %cst_17 = arith.constant 0.000000e+00 : f32
    %42 = vector.shape_cast %20 : vector<1x256xi1> to vector<1x256xi1>
    %43 = vector.broadcast %42 : vector<1x256xi1> to vector<32x256xi1>
    %44 = vector.broadcast %cst_17 : f32 to vector<32x256xf32>
    %45 = arith.select %43, %41, %44 : vector<32x256xi1>, vector<32x256xf32>
    %46 = arith.addf %37, %45 : vector<32x256xf32>
    %47 = vector.extract_strided_slice %22 {offsets = [0, 127], sizes = [4, 256], strides = [1, 1]} : vector<4x512xbf16> to vector<4x256xbf16>
    %c3 = arith.constant 3 : index
    %c0_18 = arith.constant 0 : index
    %c0_19 = arith.constant 0 : index
    %48 = vector.load %arg2[%c3, %c0_18, %c0_19] : memref<9x32x4xbf16, #tpu.memory_space<vmem>>, vector<1x32x4xbf16>
    %49 = vector.shape_cast %48 : vector<1x32x4xbf16> to vector<32x4xbf16>
    %cst_20 = arith.constant dense<0.000000e+00> : vector<32x256xf32>
    %50 = tpu.matmul %49, %47, %cst_20 {dimension_numbers = #tpu.dot_dimension_numbers<[1], [0], [0], [1], [0, 0, 1, 1], [], []>} : vector<32x4xbf16>, vector<4x256xbf16>, vector<32x256xf32> -> vector<32x256xf32>
    %cst_21 = arith.constant 0.000000e+00 : f32
    %51 = vector.shape_cast %18 : vector<1x256xi1> to vector<1x256xi1>
    %52 = vector.broadcast %51 : vector<1x256xi1> to vector<32x256xi1>
    %53 = vector.broadcast %cst_21 : f32 to vector<32x256xf32>
    %54 = arith.select %52, %50, %53 : vector<32x256xi1>, vector<32x256xf32>
    %55 = arith.addf %46, %54 : vector<32x256xf32>
    %56 = vector.extract_strided_slice %22 {offsets = [0, 128], sizes = [4, 256], strides = [1, 1]} : vector<4x512xbf16> to vector<4x256xbf16>
    %c4 = arith.constant 4 : index
    %c0_22 = arith.constant 0 : index
    %c0_23 = arith.constant 0 : index
    %57 = vector.load %arg2[%c4, %c0_22, %c0_23] : memref<9x32x4xbf16, #tpu.memory_space<vmem>>, vector<1x32x4xbf16>
    %58 = vector.shape_cast %57 : vector<1x32x4xbf16> to vector<32x4xbf16>
    %cst_24 = arith.constant dense<0.000000e+00> : vector<32x256xf32>
    %59 = tpu.matmul %58, %56, %cst_24 {dimension_numbers = #tpu.dot_dimension_numbers<[1], [0], [0], [1], [0, 0, 1, 1], [], []>} : vector<32x4xbf16>, vector<4x256xbf16>, vector<32x256xf32> -> vector<32x256xf32>
    %60 = arith.addf %55, %59 : vector<32x256xf32>
    %61 = vector.extract_strided_slice %22 {offsets = [0, 129], sizes = [4, 256], strides = [1, 1]} : vector<4x512xbf16> to vector<4x256xbf16>
    %c5 = arith.constant 5 : index
    %c0_25 = arith.constant 0 : index
    %c0_26 = arith.constant 0 : index
    %62 = vector.load %arg2[%c5, %c0_25, %c0_26] : memref<9x32x4xbf16, #tpu.memory_space<vmem>>, vector<1x32x4xbf16>
    %63 = vector.shape_cast %62 : vector<1x32x4xbf16> to vector<32x4xbf16>
    %cst_27 = arith.constant dense<0.000000e+00> : vector<32x256xf32>
    %64 = tpu.matmul %63, %61, %cst_27 {dimension_numbers = #tpu.dot_dimension_numbers<[1], [0], [0], [1], [0, 0, 1, 1], [], []>} : vector<32x4xbf16>, vector<4x256xbf16>, vector<32x256xf32> -> vector<32x256xf32>
    %cst_28 = arith.constant 0.000000e+00 : f32
    %65 = vector.shape_cast %20 : vector<1x256xi1> to vector<1x256xi1>
    %66 = vector.broadcast %65 : vector<1x256xi1> to vector<32x256xi1>
    %67 = vector.broadcast %cst_28 : f32 to vector<32x256xf32>
    %68 = arith.select %66, %64, %67 : vector<32x256xi1>, vector<32x256xf32>
    %69 = arith.addf %60, %68 : vector<32x256xf32>
    %70 = vector.extract_strided_slice %22 {offsets = [0, 143], sizes = [4, 256], strides = [1, 1]} : vector<4x512xbf16> to vector<4x256xbf16>
    %c6 = arith.constant 6 : index
    %c0_29 = arith.constant 0 : index
    %c0_30 = arith.constant 0 : index
    %71 = vector.load %arg2[%c6, %c0_29, %c0_30] : memref<9x32x4xbf16, #tpu.memory_space<vmem>>, vector<1x32x4xbf16>
    %72 = vector.shape_cast %71 : vector<1x32x4xbf16> to vector<32x4xbf16>
    %cst_31 = arith.constant dense<0.000000e+00> : vector<32x256xf32>
    %73 = tpu.matmul %72, %70, %cst_31 {dimension_numbers = #tpu.dot_dimension_numbers<[1], [0], [0], [1], [0, 0, 1, 1], [], []>} : vector<32x4xbf16>, vector<4x256xbf16>, vector<32x256xf32> -> vector<32x256xf32>
    %cst_32 = arith.constant 0.000000e+00 : f32
    %74 = vector.shape_cast %18 : vector<1x256xi1> to vector<1x256xi1>
    %75 = vector.broadcast %74 : vector<1x256xi1> to vector<32x256xi1>
    %76 = vector.broadcast %cst_32 : f32 to vector<32x256xf32>
    %77 = arith.select %75, %73, %76 : vector<32x256xi1>, vector<32x256xf32>
    %78 = arith.addf %69, %77 : vector<32x256xf32>
    %79 = vector.extract_strided_slice %22 {offsets = [0, 144], sizes = [4, 256], strides = [1, 1]} : vector<4x512xbf16> to vector<4x256xbf16>
    %c7 = arith.constant 7 : index
    %c0_33 = arith.constant 0 : index
    %c0_34 = arith.constant 0 : index
    %80 = vector.load %arg2[%c7, %c0_33, %c0_34] : memref<9x32x4xbf16, #tpu.memory_space<vmem>>, vector<1x32x4xbf16>
    %81 = vector.shape_cast %80 : vector<1x32x4xbf16> to vector<32x4xbf16>
    %cst_35 = arith.constant dense<0.000000e+00> : vector<32x256xf32>
    %82 = tpu.matmul %81, %79, %cst_35 {dimension_numbers = #tpu.dot_dimension_numbers<[1], [0], [0], [1], [0, 0, 1, 1], [], []>} : vector<32x4xbf16>, vector<4x256xbf16>, vector<32x256xf32> -> vector<32x256xf32>
    %83 = arith.addf %78, %82 : vector<32x256xf32>
    %84 = vector.extract_strided_slice %22 {offsets = [0, 145], sizes = [4, 256], strides = [1, 1]} : vector<4x512xbf16> to vector<4x256xbf16>
    %c8 = arith.constant 8 : index
    %c0_36 = arith.constant 0 : index
    %c0_37 = arith.constant 0 : index
    %85 = vector.load %arg2[%c8, %c0_36, %c0_37] : memref<9x32x4xbf16, #tpu.memory_space<vmem>>, vector<1x32x4xbf16>
    %86 = vector.shape_cast %85 : vector<1x32x4xbf16> to vector<32x4xbf16>
    %cst_38 = arith.constant dense<0.000000e+00> : vector<32x256xf32>
    %87 = tpu.matmul %86, %84, %cst_38 {dimension_numbers = #tpu.dot_dimension_numbers<[1], [0], [0], [1], [0, 0, 1, 1], [], []>} : vector<32x4xbf16>, vector<4x256xbf16>, vector<32x256xf32> -> vector<32x256xf32>
    %cst_39 = arith.constant 0.000000e+00 : f32
    %88 = vector.shape_cast %20 : vector<1x256xi1> to vector<1x256xi1>
    %89 = vector.broadcast %88 : vector<1x256xi1> to vector<32x256xi1>
    %90 = vector.broadcast %cst_39 : f32 to vector<32x256xf32>
    %91 = arith.select %89, %87, %90 : vector<32x256xi1>, vector<32x256xf32>
    %92 = arith.addf %83, %91 : vector<32x256xf32>
    %c0_40 = arith.constant 0 : index
    %c0_41 = arith.constant 0 : index
    %93 = vector.load %arg4[%c0_40, %c0_41] : memref<32x1xf32, #tpu.memory_space<vmem>>, vector<32x1xf32>
    %94 = vector.broadcast %93 : vector<32x1xf32> to vector<32x256xf32>
    %95 = arith.addf %92, %94 : vector<32x256xf32>
    %cst_42 = arith.constant 2.000000e+01 : f32
    %96 = vector.broadcast %cst_42 : f32 to vector<32x256xf32>
    %97 = arith.cmpf ogt, %95, %96 : vector<32x256xf32>
    %98 = math.exp %95 : vector<32x256xf32>
    %99 = math.log1p %98 : vector<32x256xf32>
    %100 = arith.select %97, %95, %99 : vector<32x256xi1>, vector<32x256xf32>
    %cst_43 = arith.constant 0.000000e+00 : bf16
    %101 = vector.broadcast %cst_43 : bf16 to vector<32x512xbf16>
    %c0_44 = arith.constant 0 : index
    %c0_45 = arith.constant 0 : index
    %102 = vector.load %arg7[%c0_44, %c0_45] : memref<32x512xbf16, #tpu.memory_space<vmem>>, vector<32x512xbf16>
    tpu.vector_store %arg7[%c0_44, %c0_45], %101 {strides = array<i32>} : memref<32x512xbf16, #tpu.memory_space<vmem>>, vector<32x512xbf16>,
    %103 = arith.truncf %100 : vector<32x256xf32> to vector<32x256xbf16>
    %c0_46 = arith.constant 0 : index
    %c128 = arith.constant 128 : index
    %104 = vector.load %arg7[%c0_46, %c128] : memref<32x512xbf16, #tpu.memory_space<vmem>>, vector<32x256xbf16>
    tpu.vector_store %arg7[%c0_46, %c128], %103 {strides = array<i32>} : memref<32x512xbf16, #tpu.memory_space<vmem>>, vector<32x256xbf16>,
    %c0_47 = arith.constant 0 : index
    %c0_48 = arith.constant 0 : index
    %105 = vector.load %arg7[%c0_47, %c0_48] : memref<32x512xbf16, #tpu.memory_space<vmem>>, vector<32x512xbf16>
    %cst_49 = arith.constant 0.000000e+00 : f32
    %106 = vector.broadcast %cst_49 : f32 to vector<32x256xf32>
    %107 = vector.extract_strided_slice %105 {offsets = [0, 111], sizes = [32, 256], strides = [1, 1]} : vector<32x512xbf16> to vector<32x256xbf16>
    %c0_50 = arith.constant 0 : index
    %c0_51 = arith.constant 0 : index
    %c0_52 = arith.constant 0 : index
    %108 = vector.load %arg3[%c0_50, %c0_51, %c0_52] : memref<9x32x32xbf16, #tpu.memory_space<vmem>>, vector<1x32x32xbf16>
    %109 = vector.shape_cast %108 : vector<1x32x32xbf16> to vector<32x32xbf16>
    %cst_53 = arith.constant dense<0.000000e+00> : vector<32x256xf32>
    %110 = tpu.matmul %109, %107, %cst_53 {dimension_numbers = #tpu.dot_dimension_numbers<[1], [0], [0], [1], [0, 0, 1, 1], [], []>} : vector<32x32xbf16>, vector<32x256xbf16>, vector<32x256xf32> -> vector<32x256xf32>
    %cst_54 = arith.constant 0.000000e+00 : f32
    %111 = vector.shape_cast %18 : vector<1x256xi1> to vector<1x256xi1>
    %112 = vector.broadcast %111 : vector<1x256xi1> to vector<32x256xi1>
    %113 = vector.broadcast %cst_54 : f32 to vector<32x256xf32>
    %114 = arith.select %112, %110, %113 : vector<32x256xi1>, vector<32x256xf32>
    %115 = arith.addf %106, %114 : vector<32x256xf32>
    %116 = vector.extract_strided_slice %105 {offsets = [0, 112], sizes = [32, 256], strides = [1, 1]} : vector<32x512xbf16> to vector<32x256xbf16>
    %c1_55 = arith.constant 1 : index
    %c0_56 = arith.constant 0 : index
    %c0_57 = arith.constant 0 : index
    %117 = vector.load %arg3[%c1_55, %c0_56, %c0_57] : memref<9x32x32xbf16, #tpu.memory_space<vmem>>, vector<1x32x32xbf16>
    %118 = vector.shape_cast %117 : vector<1x32x32xbf16> to vector<32x32xbf16>
    %cst_58 = arith.constant dense<0.000000e+00> : vector<32x256xf32>
    %119 = tpu.matmul %118, %116, %cst_58 {dimension_numbers = #tpu.dot_dimension_numbers<[1], [0], [0], [1], [0, 0, 1, 1], [], []>} : vector<32x32xbf16>, vector<32x256xbf16>, vector<32x256xf32> -> vector<32x256xf32>
    %120 = arith.addf %115, %119 : vector<32x256xf32>
    %121 = vector.extract_strided_slice %105 {offsets = [0, 113], sizes = [32, 256], strides = [1, 1]} : vector<32x512xbf16> to vector<32x256xbf16>
    %c2_59 = arith.constant 2 : index
    %c0_60 = arith.constant 0 : index
    %c0_61 = arith.constant 0 : index
    %122 = vector.load %arg3[%c2_59, %c0_60, %c0_61] : memref<9x32x32xbf16, #tpu.memory_space<vmem>>, vector<1x32x32xbf16>
    %123 = vector.shape_cast %122 : vector<1x32x32xbf16> to vector<32x32xbf16>
    %cst_62 = arith.constant dense<0.000000e+00> : vector<32x256xf32>
    %124 = tpu.matmul %123, %121, %cst_62 {dimension_numbers = #tpu.dot_dimension_numbers<[1], [0], [0], [1], [0, 0, 1, 1], [], []>} : vector<32x32xbf16>, vector<32x256xbf16>, vector<32x256xf32> -> vector<32x256xf32>
    %cst_63 = arith.constant 0.000000e+00 : f32
    %125 = vector.shape_cast %20 : vector<1x256xi1> to vector<1x256xi1>
    %126 = vector.broadcast %125 : vector<1x256xi1> to vector<32x256xi1>
    %127 = vector.broadcast %cst_63 : f32 to vector<32x256xf32>
    %128 = arith.select %126, %124, %127 : vector<32x256xi1>, vector<32x256xf32>
    %129 = arith.addf %120, %128 : vector<32x256xf32>
    %130 = vector.extract_strided_slice %105 {offsets = [0, 127], sizes = [32, 256], strides = [1, 1]} : vector<32x512xbf16> to vector<32x256xbf16>
    %c3_64 = arith.constant 3 : index
    %c0_65 = arith.constant 0 : index
    %c0_66 = arith.constant 0 : index
    %131 = vector.load %arg3[%c3_64, %c0_65, %c0_66] : memref<9x32x32xbf16, #tpu.memory_space<vmem>>, vector<1x32x32xbf16>
    %132 = vector.shape_cast %131 : vector<1x32x32xbf16> to vector<32x32xbf16>
    %cst_67 = arith.constant dense<0.000000e+00> : vector<32x256xf32>
    %133 = tpu.matmul %132, %130, %cst_67 {dimension_numbers = #tpu.dot_dimension_numbers<[1], [0], [0], [1], [0, 0, 1, 1], [], []>} : vector<32x32xbf16>, vector<32x256xbf16>, vector<32x256xf32> -> vector<32x256xf32>
    %cst_68 = arith.constant 0.000000e+00 : f32
    %134 = vector.shape_cast %18 : vector<1x256xi1> to vector<1x256xi1>
    %135 = vector.broadcast %134 : vector<1x256xi1> to vector<32x256xi1>
    %136 = vector.broadcast %cst_68 : f32 to vector<32x256xf32>
    %137 = arith.select %135, %133, %136 : vector<32x256xi1>, vector<32x256xf32>
    %138 = arith.addf %129, %137 : vector<32x256xf32>
    %139 = vector.extract_strided_slice %105 {offsets = [0, 128], sizes = [32, 256], strides = [1, 1]} : vector<32x512xbf16> to vector<32x256xbf16>
    %c4_69 = arith.constant 4 : index
    %c0_70 = arith.constant 0 : index
    %c0_71 = arith.constant 0 : index
    %140 = vector.load %arg3[%c4_69, %c0_70, %c0_71] : memref<9x32x32xbf16, #tpu.memory_space<vmem>>, vector<1x32x32xbf16>
    %141 = vector.shape_cast %140 : vector<1x32x32xbf16> to vector<32x32xbf16>
    %cst_72 = arith.constant dense<0.000000e+00> : vector<32x256xf32>
    %142 = tpu.matmul %141, %139, %cst_72 {dimension_numbers = #tpu.dot_dimension_numbers<[1], [0], [0], [1], [0, 0, 1, 1], [], []>} : vector<32x32xbf16>, vector<32x256xbf16>, vector<32x256xf32> -> vector<32x256xf32>
    %143 = arith.addf %138, %142 : vector<32x256xf32>
    %144 = vector.extract_strided_slice %105 {offsets = [0, 129], sizes = [32, 256], strides = [1, 1]} : vector<32x512xbf16> to vector<32x256xbf16>
    %c5_73 = arith.constant 5 : index
    %c0_74 = arith.constant 0 : index
    %c0_75 = arith.constant 0 : index
    %145 = vector.load %arg3[%c5_73, %c0_74, %c0_75] : memref<9x32x32xbf16, #tpu.memory_space<vmem>>, vector<1x32x32xbf16>
    %146 = vector.shape_cast %145 : vector<1x32x32xbf16> to vector<32x32xbf16>
    %cst_76 = arith.constant dense<0.000000e+00> : vector<32x256xf32>
    %147 = tpu.matmul %146, %144, %cst_76 {dimension_numbers = #tpu.dot_dimension_numbers<[1], [0], [0], [1], [0, 0, 1, 1], [], []>} : vector<32x32xbf16>, vector<32x256xbf16>, vector<32x256xf32> -> vector<32x256xf32>
    %cst_77 = arith.constant 0.000000e+00 : f32
    %148 = vector.shape_cast %20 : vector<1x256xi1> to vector<1x256xi1>
    %149 = vector.broadcast %148 : vector<1x256xi1> to vector<32x256xi1>
    %150 = vector.broadcast %cst_77 : f32 to vector<32x256xf32>
    %151 = arith.select %149, %147, %150 : vector<32x256xi1>, vector<32x256xf32>
    %152 = arith.addf %143, %151 : vector<32x256xf32>
    %153 = vector.extract_strided_slice %105 {offsets = [0, 143], sizes = [32, 256], strides = [1, 1]} : vector<32x512xbf16> to vector<32x256xbf16>
    %c6_78 = arith.constant 6 : index
    %c0_79 = arith.constant 0 : index
    %c0_80 = arith.constant 0 : index
    %154 = vector.load %arg3[%c6_78, %c0_79, %c0_80] : memref<9x32x32xbf16, #tpu.memory_space<vmem>>, vector<1x32x32xbf16>
    %155 = vector.shape_cast %154 : vector<1x32x32xbf16> to vector<32x32xbf16>
    %cst_81 = arith.constant dense<0.000000e+00> : vector<32x256xf32>
    %156 = tpu.matmul %155, %153, %cst_81 {dimension_numbers = #tpu.dot_dimension_numbers<[1], [0], [0], [1], [0, 0, 1, 1], [], []>} : vector<32x32xbf16>, vector<32x256xbf16>, vector<32x256xf32> -> vector<32x256xf32>
    %cst_82 = arith.constant 0.000000e+00 : f32
    %157 = vector.shape_cast %18 : vector<1x256xi1> to vector<1x256xi1>
    %158 = vector.broadcast %157 : vector<1x256xi1> to vector<32x256xi1>
    %159 = vector.broadcast %cst_82 : f32 to vector<32x256xf32>
    %160 = arith.select %158, %156, %159 : vector<32x256xi1>, vector<32x256xf32>
    %161 = arith.addf %152, %160 : vector<32x256xf32>
    %162 = vector.extract_strided_slice %105 {offsets = [0, 144], sizes = [32, 256], strides = [1, 1]} : vector<32x512xbf16> to vector<32x256xbf16>
    %c7_83 = arith.constant 7 : index
    %c0_84 = arith.constant 0 : index
    %c0_85 = arith.constant 0 : index
    %163 = vector.load %arg3[%c7_83, %c0_84, %c0_85] : memref<9x32x32xbf16, #tpu.memory_space<vmem>>, vector<1x32x32xbf16>
    %164 = vector.shape_cast %163 : vector<1x32x32xbf16> to vector<32x32xbf16>
    %cst_86 = arith.constant dense<0.000000e+00> : vector<32x256xf32>
    %165 = tpu.matmul %164, %162, %cst_86 {dimension_numbers = #tpu.dot_dimension_numbers<[1], [0], [0], [1], [0, 0, 1, 1], [], []>} : vector<32x32xbf16>, vector<32x256xbf16>, vector<32x256xf32> -> vector<32x256xf32>
    %166 = arith.addf %161, %165 : vector<32x256xf32>
    %167 = vector.extract_strided_slice %105 {offsets = [0, 145], sizes = [32, 256], strides = [1, 1]} : vector<32x512xbf16> to vector<32x256xbf16>
    %c8_87 = arith.constant 8 : index
    %c0_88 = arith.constant 0 : index
    %c0_89 = arith.constant 0 : index
    %168 = vector.load %arg3[%c8_87, %c0_88, %c0_89] : memref<9x32x32xbf16, #tpu.memory_space<vmem>>, vector<1x32x32xbf16>
    %169 = vector.shape_cast %168 : vector<1x32x32xbf16> to vector<32x32xbf16>
    %cst_90 = arith.constant dense<0.000000e+00> : vector<32x256xf32>
    %170 = tpu.matmul %169, %167, %cst_90 {dimension_numbers = #tpu.dot_dimension_numbers<[1], [0], [0], [1], [0, 0, 1, 1], [], []>} : vector<32x32xbf16>, vector<32x256xbf16>, vector<32x256xf32> -> vector<32x256xf32>
    %cst_91 = arith.constant 0.000000e+00 : f32
    %171 = vector.shape_cast %20 : vector<1x256xi1> to vector<1x256xi1>
    %172 = vector.broadcast %171 : vector<1x256xi1> to vector<32x256xi1>
    %173 = vector.broadcast %cst_91 : f32 to vector<32x256xf32>
    %174 = arith.select %172, %170, %173 : vector<32x256xi1>, vector<32x256xf32>
    %175 = arith.addf %166, %174 : vector<32x256xf32>
    %c0_92 = arith.constant 0 : index
    %c0_93 = arith.constant 0 : index
    %176 = vector.load %arg5[%c0_92, %c0_93] : memref<32x1xf32, #tpu.memory_space<vmem>>, vector<32x1xf32>
    %177 = vector.broadcast %176 : vector<32x1xf32> to vector<32x256xf32>
    %178 = arith.addf %175, %177 : vector<32x256xf32>
    %cst_94 = arith.constant 2.000000e+01 : f32
    %179 = vector.broadcast %cst_94 : f32 to vector<32x256xf32>
    %180 = arith.cmpf ogt, %178, %179 : vector<32x256xf32>
    %181 = math.exp %178 : vector<32x256xf32>
    %182 = math.log1p %181 : vector<32x256xf32>
    %183 = arith.select %180, %178, %182 : vector<32x256xi1>, vector<32x256xf32>
    %c0_95 = arith.constant 0 : index
    %c0_96 = arith.constant 0 : index
    %c0_97 = arith.constant 0 : index
    %184 = vector.load %arg6[%c0_95, %c0_96, %c0_97] : memref<1x32x256xf32, #tpu.memory_space<vmem>>, vector<1x32x256xf32>
    %185 = vector.shape_cast %184 : vector<1x32x256xf32> to vector<32x256xf32>
    %186 = vector.shape_cast %183 : vector<32x256xf32> to vector<1x32x256xf32>
    tpu.vector_store %arg6[%c0_95, %c0_96, %c0_97], %186 {strides = array<i32>} : memref<1x32x256xf32, #tpu.memory_space<vmem>>, vector<1x32x256xf32>,
    return
  }
  func.func @transform_0(%arg0: i32) -> (i32, i32, i32) {
    %c0_i32 = arith.constant 0 : i32
    %c0_i32_0 = arith.constant 0 : i32
    %c0_i32_1 = arith.constant 0 : i32
    return %arg0, %c0_i32, %c0_i32_0 : i32, i32, i32
  }
  func.func @transform_1(%arg0: i32) -> (i32, i32, i32) {
    %c0_i32 = arith.constant 0 : i32
    %c0_i32_0 = arith.constant 0 : i32
    %c0_i32_1 = arith.constant 0 : i32
    %c0_i32_2 = arith.constant 0 : i32
    return %c0_i32, %c0_i32_0, %c0_i32_1 : i32, i32, i32
  }
  func.func @transform_2(%arg0: i32) -> (i32, i32, i32) {
    %c0_i32 = arith.constant 0 : i32
    %c0_i32_0 = arith.constant 0 : i32
    %c0_i32_1 = arith.constant 0 : i32
    %c0_i32_2 = arith.constant 0 : i32
    return %c0_i32, %c0_i32_0, %c0_i32_1 : i32, i32, i32
  }
  func.func @transform_3(%arg0: i32) -> (i32, i32) {
    %c0_i32 = arith.constant 0 : i32
    %c0_i32_0 = arith.constant 0 : i32
    %c0_i32_1 = arith.constant 0 : i32
    return %c0_i32, %c0_i32_0 : i32, i32
  }
  func.func @transform_4(%arg0: i32) -> (i32, i32) {
    %c0_i32 = arith.constant 0 : i32
    %c0_i32_0 = arith.constant 0 : i32
    %c0_i32_1 = arith.constant 0 : i32
    return %c0_i32, %c0_i32_0 : i32, i32
  }
  func.func @transform_5(%arg0: i32) -> (i32, i32, i32) {
    %c0_i32 = arith.constant 0 : i32
    %c0_i32_0 = arith.constant 0 : i32
    %c0_i32_1 = arith.constant 0 : i32
    return %arg0, %c0_i32, %c0_i32_0 : i32, i32, i32
  }
}

</mosaic_0001>

<llo_original>
// kernel: regularized_model_idr_forward.1
$region0: #{regularized_model_idr_forward.1}
  #allocation0 [shape = 'u32[]', space=smem, size = 0x4, offset = 0x4, fixed_abs, tag = 'smem constant byte address 0x4 - core index']
  #allocation1 [shape = 'u32[144,128]{1,0:T(1,128)}', space=vmem, size = 0x12000, scoped, tag = 'internal scratch']
  #allocation2 [shape = 'bf16[32,512]{1,0:T(8,128)(2,1)}', space=vmem, size = 0x8000, scoped, tag = 'scratch operand']
  %s0 = inlined_call_operand.vmem [shape: bf16[2,4,512], index: 0, kind: input, shape index: {}]
  %s1 = inlined_call_operand.vmem [shape: bf16[9,32,4], index: 1, kind: input, shape index: {}]
  %s2 = inlined_call_operand.vmem [shape: bf16[9,32,32], index: 2, kind: input, shape index: {}]
  %s3 = inlined_call_operand.vmem [shape: f32[32,1], index: 3, kind: input, shape index: {}]
  %s4 = inlined_call_operand.vmem [shape: f32[32,1], index: 4, kind: input, shape index: {}]
  %s5 = inlined_call_operand.vmem [shape: f32[2,32,256], index: 5, kind: output, shape index: {}]
  %s6 = sld [smem:[#allocation0]]
  $region53: #{regularized_model_idr_forward.1} parent=0
    _
  %s8 = ssub.s32 1, %s6
  %s9 = scalar_select 0, %s8, %s6
  loop: start=0, step=1, limit=4
  $region2: #{regularized_model_idr_forward.1} parent=0 // loop_pre_header
    _
  $region3: #{regularized_model_idr_forward.1} parent=0 // loop_header
    %s11 = sphi 0, %s15
    %p12 = scmp.ge.s32.totalorder %s11, 4
    %s21 = sphi 0, %s23
    %s24 = sphi 0, %s21
    %s25 = sphi 0, %s24
    %s41 = sphi 0, %s25
    %s45 = sphi 0, %s45
    %s47 = sphi 0, %s45
    %s48 = sphi 0, %s47
    %s62 = sphi 0, %s48
    %s66 = sphi 0, %s66
    %s68 = sphi 0, %s66
    %s69 = sphi 0, %s68
    %s83 = sphi 0, %s69
    %s87 = sphi 0, %s87
    %s89 = sphi 0, %s87
    %s90 = sphi 0, %s89
    %s104 = sphi 0, %s90
    %s108 = sphi 0, %s108
    %s110 = sphi 0, %s108
    %s111 = sphi 0, %s110
    %s125 = sphi 0, %s111
    %s131 = sphi 0, %s133
    %s134 = sphi 0, %s131
    %s135 = sphi 0, %s134
    %s151 = sphi 0, %s135
  $region4: #{regularized_model_idr_forward.1} parent=0 // loop_header_branch
    %14 = sbr.rel (%p12) target = $region8
  $region5: #{regularized_model_idr_forward.1} parent=0 // loop_body
    %s16 = ssub.s32 %s11, 1
    %s17 = ssub.s32 %s11, 2
    %s18 = sadd.s32 %s11, 1
    %s19 = ssub.s32 %s11, %s18
    %p20 = scmp.eq.s32.totalorder %s19, 0
    %s22 = sadd.s32 %s21, 1
    %s23 = scalar_select %p20, %s21, %s22
    %p26 = pneg %p20
    %p27 = scmp.eq.s32.totalorder %s11, 1
    %p28 = por %p26, %p27
    %p29 = scmp.ne.s32.totalorder %s21, %s24
    %p30 = scmp.eq.s32.totalorder %s11, 0
    %p31 = por %p29, %p30
    %p32 = scmp.ne.s32.totalorder %s21, %s24
    %p33 = scmp.eq.s32.totalorder %s16, 1
    %p34 = por %p32, %p33
    %p35 = scmp.ne.s32.totalorder %s24, %s25
    %p36 = scmp.eq.s32.totalorder %s16, 0
    %p37 = por %p35, %p36
    %p38 = scmp.ne.s32.totalorder %s24, %s25
    %p39 = scmp.eq.s32.totalorder %s17, 1
    %p40 = por %p38, %p39
    %p42 = scmp.ne.s32.totalorder %s25, %s41
    %p43 = scmp.eq.s32.totalorder %s17, 0
    %p44 = por %p42, %p43
    %s46 = sadd.s32 %s45, 1
    %p49 = scmp.eq.s32.totalorder %s11, 1
    %p50 = scmp.ne.s32.totalorder %s45, %s47
    %p51 = scmp.eq.s32.totalorder %s11, 0
    %p52 = por %p50, %p51
    %p53 = scmp.ne.s32.totalorder %s45, %s47
    %p54 = scmp.eq.s32.totalorder %s16, 1
    %p55 = por %p53, %p54
    %p56 = scmp.ne.s32.totalorder %s47, %s48
    %p57 = scmp.eq.s32.totalorder %s16, 0
    %p58 = por %p56, %p57
    %p59 = scmp.ne.s32.totalorder %s47, %s48
    %p60 = scmp.eq.s32.totalorder %s17, 1
    %p61 = por %p59, %p60
    %p63 = scmp.ne.s32.totalorder %s48, %s62
    %p64 = scmp.eq.s32.totalorder %s17, 0
    %p65 = por %p63, %p64
    %s67 = sadd.s32 %s66, 1
    %p70 = scmp.eq.s32.totalorder %s11, 1
    %p71 = scmp.ne.s32.totalorder %s66, %s68
    %p72 = scmp.eq.s32.totalorder %s11, 0
    %p73 = por %p71, %p72
    %p74 = scmp.ne.s32.totalorder %s66, %s68
    %p75 = scmp.eq.s32.totalorder %s16, 1
    %p76 = por %p74, %p75
    %p77 = scmp.ne.s32.totalorder %s68, %s69
    %p78 = scmp.eq.s32.totalorder %s16, 0
    %p79 = por %p77, %p78
    %p80 = scmp.ne.s32.totalorder %s68, %s69
    %p81 = scmp.eq.s32.totalorder %s17, 1
    %p82 = por %p80, %p81
    %p84 = scmp.ne.s32.totalorder %s69, %s83
    %p85 = scmp.eq.s32.totalorder %s17, 0
    %p86 = por %p84, %p85
    %s88 = sadd.s32 %s87, 1
    %p91 = scmp.eq.s32.totalorder %s11, 1
    %p92 = scmp.ne.s32.totalorder %s87, %s89
    %p93 = scmp.eq.s32.totalorder %s11, 0
    %p94 = por %p92, %p93
    %p95 = scmp.ne.s32.totalorder %s87, %s89
    %p96 = scmp.eq.s32.totalorder %s16, 1
    %p97 = por %p95, %p96
    %p98 = scmp.ne.s32.totalorder %s89, %s90
    %p99 = scmp.eq.s32.totalorder %s16, 0
    %p100 = por %p98, %p99
    %p101 = scmp.ne.s32.totalorder %s89, %s90
    %p102 = scmp.eq.s32.totalorder %s17, 1
    %p103 = por %p101, %p102
    %p105 = scmp.ne.s32.totalorder %s90, %s104
    %p106 = scmp.eq.s32.totalorder %s17, 0
    %p107 = por %p105, %p106
    %s109 = sadd.s32 %s108, 1
    %p112 = scmp.eq.s32.totalorder %s11, 1
    %p113 = scmp.ne.s32.totalorder %s108, %s110
    %p114 = scmp.eq.s32.totalorder %s11, 0
    %p115 = por %p113, %p114
    %p116 = scmp.ne.s32.totalorder %s108, %s110
    %p117 = scmp.eq.s32.totalorder %s16, 1
    %p118 = por %p116, %p117
    %p119 = scmp.ne.s32.totalorder %s110, %s111
    %p120 = scmp.eq.s32.totalorder %s16, 0
    %p121 = por %p119, %p120
    %p122 = scmp.ne.s32.totalorder %s110, %s111
    %p123 = scmp.eq.s32.totalorder %s17, 1
    %p124 = por %p122, %p123
    %p126 = scmp.ne.s32.totalorder %s111, %s125
    %p127 = scmp.eq.s32.totalorder %s17, 0
    %p128 = por %p126, %p127
    %s129 = ssub.s32 %s11, %s18
    %p130 = scmp.eq.s32.totalorder %s129, 0
    %s132 = sadd.s32 %s131, 1
    %s133 = scalar_select %p130, %s131, %s132
    %p136 = pneg %p130
    %p137 = scmp.eq.s32.totalorder %s11, 1
    %p138 = por %p136, %p137
    %p139 = scmp.ne.s32.totalorder %s131, %s134
    %p140 = scmp.eq.s32.totalorder %s11, 0
    %p141 = por %p139, %p140
    %p142 = scmp.ne.s32.totalorder %s131, %s134
    %p143 = scmp.eq.s32.totalorder %s16, 1
    %p144 = por %p142, %p143
    %p145 = scmp.ne.s32.totalorder %s134, %s135
    %p146 = scmp.eq.s32.totalorder %s16, 0
    %p147 = por %p145, %p146
    %p148 = scmp.ne.s32.totalorder %s134, %s135
    %p149 = scmp.eq.s32.totalorder %s17, 1
    %p150 = por %p148, %p149
    %p152 = scmp.ne.s32.totalorder %s135, %s151
    %p153 = scmp.eq.s32.totalorder %s17, 0
    %p154 = por %p152, %p153
    %p155 = scmp.le.s32.totalorder 1, %s11
    %p156 = scmp.lt.s32.totalorder %s11, 3
    %p157 = pnand %p155, %p156
    %p158 = pneg %p157
    // Predicated region
    $region9: #{regularized_model_idr_forward.1} parent=5 // pred_check
      _
    $region10: #{regularized_model_idr_forward.1} parent=5 // pred_check_branch
      %160 = sbr.rel (%p157) target = $region12
    $region11: #{regularized_model_idr_forward.1} parent=5 // pred_region
      %s161 = ssub.s32 %s11, 1
      // Predicated region
      $region13: #{regularized_model_idr_forward.1} parent=11 // pred_check
        %p162 = pneg %p58
      $region14: #{regularized_model_idr_forward.1} parent=11 // pred_check_branch
        %164 = sbr.rel (%p162) target = $region16
      $region15: #{regularized_model_idr_forward.1} parent=11 // pred_region
        _
      $region16: #{regularized_model_idr_forward.1} parent=11 // pred_fallthru
        _
      // Predicated region
      $region17: #{regularized_model_idr_forward.1} parent=11 // pred_check
        %p165 = pneg %p79
      $region18: #{regularized_model_idr_forward.1} parent=11 // pred_check_branch
        %167 = sbr.rel (%p165) target = $region20
      $region19: #{regularized_model_idr_forward.1} parent=11 // pred_region
        _
      $region20: #{regularized_model_idr_forward.1} parent=11 // pred_fallthru
        _
      // Predicated region
      $region21: #{regularized_model_idr_forward.1} parent=11 // pred_check
        %p168 = pneg %p100
      $region22: #{regularized_model_idr_forward.1} parent=11 // pred_check_branch
        %170 = sbr.rel (%p168) target = $region24
      $region23: #{regularized_model_idr_forward.1} parent=11 // pred_region
        _
      $region24: #{regularized_model_idr_forward.1} parent=11 // pred_fallthru
        _
      // Predicated region
      $region25: #{regularized_model_idr_forward.1} parent=11 // pred_check
        %p171 = pneg %p121
      $region26: #{regularized_model_idr_forward.1} parent=11 // pred_check_branch
        %173 = sbr.rel (%p171) target = $region28
      $region27: #{regularized_model_idr_forward.1} parent=11 // pred_region
        _
      $region28: #{regularized_model_idr_forward.1} parent=11 // pred_fallthru
        _
    $region12: #{regularized_model_idr_forward.1} parent=5 // pred_fallthru
      _
    %p174 = scmp.lt.s32.totalorder %s11, 2
    // Predicated region
    $region29: #{regularized_model_idr_forward.1} parent=5 // pred_check
      %p175 = pneg %p174
    $region30: #{regularized_model_idr_forward.1} parent=5 // pred_check_branch
      %177 = sbr.rel (%p175) target = $region32
    $region31: #{regularized_model_idr_forward.1} parent=5 // pred_region
      // Predicated region
      $region33: #{regularized_model_idr_forward.1} parent=31 // pred_check
        %p178 = pneg %p31
      $region34: #{regularized_model_idr_forward.1} parent=31 // pred_check_branch
        %180 = sbr.rel (%p178) target = $region36
      $region35: #{regularized_model_idr_forward.1} parent=31 // pred_region
        %p181 = scmp.lt.s32.totalorder %s11, 1
        %s182 = scalar_select %p181, %s11, 1
        %s183 = smul.addr %s182, 4
        %s184 = smul.addr %s183, 2
        %s185 = scalar_lea.vmem %s0, %s184
      $region36: #{regularized_model_idr_forward.1} parent=31 // pred_fallthru
        _
    $region32: #{regularized_model_idr_forward.1} parent=5 // pred_fallthru
      _
    %p186 = scmp.le.s32.totalorder 1, %s11
    %p187 = scmp.lt.s32.totalorder %s11, 3
    %p188 = pnand %p186, %p187
    %p189 = pneg %p188
    // Predicated region
    $region37: #{regularized_model_idr_forward.1} parent=5 // pred_check
      _
    $region38: #{regularized_model_idr_forward.1} parent=5 // pred_check_branch
      %191 = sbr.rel (%p188) target = $region40
    $region39: #{regularized_model_idr_forward.1} parent=5 // pred_region
      %s192 = ssub.s32 %s11, 1
      %p193 = scmp.lt.s32.totalorder %s16, 1
      %s194 = scalar_select %p193, %s16, 1
      %s195 = smul.addr %s194, 4
      %s196 = smul.addr %s195, 2
      %s197 = scalar_lea.vmem %s0, %s196
      %p198 = pneg %p37
      %p199 = pneg %p34
      %p200 = pneg %p58
      %p201 = pneg %p55
      %p202 = pneg %p79
      %p203 = pneg %p76
      %p204 = pneg %p100
      %p205 = pneg %p97
      %p206 = pneg %p121
      %p207 = pneg %p118
      %p208 = pneg %p147
      %p209 = pneg %p144
      %p210 = scmp.lt.s32.totalorder %s16, 1
      %s211 = scalar_select %p210, %s16, 1
      %s212 = smul.addr %s211, 8
      %s213 = smul.addr %s212, 8
      %s214 = scalar_lea.vmem %s5, %s213
      %p215 = scmp.lt.s32.totalorder %s16, 1
      %s216 = scalar_select %p215, %s16, 1
      %s217 = smul.addr %s216, 4
      %s218 = smul.addr %s217, 2
      %s219 = scalar_lea.vmem %s0, %s218
      %p220 = scmp.lt.s32.totalorder %s16, 1
      %s221 = scalar_select %p220, %s16, 1
      %s222 = smul.addr %s221, 8
      %s223 = smul.addr %s222, 8
      %s224 = scalar_lea.vmem %s5, %s223
      %v226 = vlaneseq
      %v227 = vand.u32 %v226, 127
      %v228 = vadd.s32 %v227, 128
      %vm229 = vcmp.lt.s32.totalorder %v227, 0
      %v230 = vsub.s32 0, %v227
      %v231 = vsel %vm229, %v230, %v227
      %v232 = vshrl.u32 %v231, 4
      %v233 = vand.u32 %v231, 15
      %v234 = vsub.s32 0, %v233
      %v235 = vsel %vm229, %v234, %v233
      %vm236 = vcmp.lt.s32.totalorder %v228, 0
      %v237 = vsub.s32 0, %v228
      %v238 = vsel %vm236, %v237, %v228
      %v239 = vshrl.u32 %v238, 4
      %v240 = vand.u32 %v238, 15
      %v241 = vsub.s32 0, %v240
      %v242 = vsel %vm236, %v241, %v240
      %vm243 = vcmp.ne.s32.totalorder %v235, 0
      %vm244 = vcmp.ne.s32.totalorder %v242, 0
      %vm245 = vcmp.lt.s32.totalorder %v235, 0
      %vm246 = vcmp.lt.s32.totalorder %v242, 0
      %vm247 = vmand %vm245, %vm243
      %vm248 = vmand %vm246, %vm244
      %v249 = vadd.s32 %v235, 16
      %v250 = vadd.s32 %v242, 16
      %v251 = vsel %vm247, %v249, %v235
      %v252 = vsel %vm248, %v250, %v242
      %vm253 = vcmp.ne.s32.totalorder %v251, 0
      %vm254 = vcmp.ne.s32.totalorder %v252, 0
      %vm255 = vcmp.ne.s32.totalorder %v251, 15
      %vm256 = vcmp.ne.s32.totalorder %v252, 15
      %v257 = vld [vmem:[%s219] sm:$0xff]
      %v258 = vld [vmem:[%s1] sm:$0xf]
      %v259 = vld [vmem:[%s1 + $0x4] sm:$0xf]
      %v260 = vld [vmem:[%s1 + $0x8] sm:$0xf]
      %v261 = vld [vmem:[%s1 + $0xc] sm:$0xf]
      %v266 = vunpack.c.l.b16 %v258
      %v267 = vunpack.c.l.b16 %v259
      %v268 = vunpack.c.l.b16 %v260
      %v269 = vunpack.c.l.b16 %v261
      %v270 = vpack.c.b16 %v267, %v266
      %v271 = vpack.c.b16 %v269, %v268
      %v273 = vcombine.high %v257, %v257
      %v275 = vunpack.c.l.s4 1983009808
      %v276 = vunpack.c.0.s8 %v275
      %v277 = vlaneseq
      %v278 = vshrl.u32 %v277, 7
      %v279 = vsub.s32 %v276, %v278
      %v280 = vrot.slane %v257, %v279
      %v282 = vunpack.c.l.s4 1983009808
      %v283 = vunpack.c.0.s8 %v282
      %v284 = vlaneseq
      %v285 = vshrl.u32 %v284, 7
      %v286 = vsub.s32 %v283, %v285
      %v287 = vrot.slane %v273, %v286
      %v288 = vcombine.high %v280, %v280
      %289 = vrot.lane.b32.xlu0 %v280, 17
      %v290 = vpop.permute.xlu0 %289
      %291 = vrot.lane.b32.xlu0 %v288, 17
      %v292 = vpop.permute.xlu0 %291
      %293 = vrot.lane.b32.xlu0 %v287, 17
      %v294 = vpop.permute.xlu0 %293
      %vm295 = vcmask 138240
      %v296 = vsel %vm295, %v290, %v292
      %v297 = vsel %vm295, %v292, %v294
      %vm298 = vcmask 31744
      %v300 = vsel %vm298, %v270, 0
      %v303 = vsel %vm298, %v271, 0
      %vm305 = vcmask 1041408
      %v307 = vsel %vm305, %v296, 0
      %v310 = vsel %vm305, %v297, 0
      %312 = vmatprep.subr.bf16.mxu0 0
      %313 = vmatpush1.bf16.msra.mxu0 0
      %314 = vmatprep.subr.bf16.mxu0 0
      %315 = vmatpush1.bf16.msra.mxu0 0
      %316 = vmatprep.subr.bf16.mxu0 0
      %317 = vmatpush1.bf16.msra.mxu0 0
      %318 = vmatprep.subr.bf16.mxu0 0
      %319 = vmatpush1.bf16.msra.mxu0 0
      %320 = vmatprep.subr.bf16.mxu0 0
      %321 = vmatpush1.bf16.msra.mxu0 0
      %322 = vmatprep.subr.bf16.mxu0 0
      %323 = vmatpush1.bf16.msra.mxu0 0
      %324 = vmatprep.subr.bf16.mxu0 0
      %325 = vmatpush1.bf16.msra.mxu0 0
      %326 = vmatprep.subr.bf16.mxu0 %v310
      %327 = vmatpush1.bf16.msra.mxu0 %v307
      %328 = vmatprep.subr.bf16.mxu0 0
      %329 = vmatpush2.bf16.msra.mxu0 0
      %330 = vmatprep.subr.bf16.mxu0 0
      %331 = vmatpush2.bf16.msra.mxu0 0
      %332 = vmatprep.subr.bf16.mxu0 0
      %333 = vmatpush2.bf16.msra.mxu0 0
      %334 = vmatprep.subr.bf16.mxu0 0
      %335 = vmatpush2.bf16.msra.mxu0 0
      %336 = vmatprep.subr.bf16.mxu0 0
      %337 = vmatpush2.bf16.msra.mxu0 0
      %338 = vmatprep.subr.bf16.mxu0 0
      %339 = vmatpush2.bf16.msra.mxu0 0
      %340 = vmatprep.subr.bf16.mxu0 0
      %341 = vmatpush2.bf16.msra.mxu0 0
      %342 = vmatprep.subr.bf16.mxu0 0
      %343 = vmatpush2.bf16.msra.mxu0 0
      %344 = vmatprep.mubr.bf16.mxu0 0
      %345 = vmatmul.mubr.bf16.gmra.mxu0 %v300
      %v346 = vpop.f32.mrf.mxu0
      %v347 = vadd.f32 0.0, %v346
      %v348 = vpop.f32.mrf.mxu0
      %v349 = vadd.f32 0.0, %v348
      %v350 = vpop.f32.mrf.mxu0
      %v351 = vadd.f32 0.0, %v350
      %v352 = vpop.f32.mrf.mxu0
      %v353 = vadd.f32 0.0, %v352
      %354 = vmatprep.mubr.bf16.mxu0 0
      %355 = vmatmul.mubr.bf16.gmra.mxu0 %v303
      %v356 = vpop.f32.mrf.mxu0
      %v357 = vadd.f32 0.0, %v356
      %v358 = vpop.f32.mrf.mxu0
      %v359 = vadd.f32 0.0, %v358
      %v360 = vpop.f32.mrf.mxu0
      %v361 = vadd.f32 0.0, %v360
      %v362 = vpop.f32.mrf.mxu0
      %v363 = vadd.f32 0.0, %v362
      %364 = vdwg.mxu0
      %v365 = vsel %vm253, 1, 0
      %v366 = vsel %vm254, 1, 0
      %vm367 = vcmp.eq.s32.totalorder %v365, 1
      %vm368 = vcmp.eq.s32.totalorder %v366, 1
      %v369 = vsel %vm367, %v347, 0.0
      %v370 = vsel %vm368, %v349, 0.0
      %v371 = vsel %vm367, %v351, 0.0
      %v372 = vsel %vm368, %v353, 0.0
      %v373 = vsel %vm367, %v357, 0.0
      %v374 = vsel %vm368, %v359, 0.0
      %v375 = vsel %vm367, %v361, 0.0
      %v376 = vsel %vm368, %v363, 0.0
      %v377 = vadd.f32 %v369, 0.0
      %v378 = vadd.f32 %v370, 0.0
      %v379 = vadd.f32 %v371, 0.0
      %v380 = vadd.f32 %v372, 0.0
      %v381 = vadd.f32 %v373, 0.0
      %v382 = vadd.f32 %v374, 0.0
      %v383 = vadd.f32 %v375, 0.0
      %v384 = vadd.f32 %v376, 0.0
      %s385 = scalar_lea.vmem %s1, 16
      %v386 = vld [vmem:[%s385] sm:$0xf]
      %v387 = vld [vmem:[%s385 + $0x4] sm:$0xf]
      %v388 = vld [vmem:[%s385 + $0x8] sm:$0xf]
      %v389 = vld [vmem:[%s385 + $0xc] sm:$0xf]
      %v394 = vunpack.c.l.b16 %v386
      %v395 = vunpack.c.l.b16 %v387
      %v396 = vunpack.c.l.b16 %v388
      %v397 = vunpack.c.l.b16 %v389
      %v398 = vpack.c.b16 %v395, %v394
      %v399 = vpack.c.b16 %v397, %v396
      %400 = vrot.lane.b32.xlu0 %v280, 16
      %v401 = vpop.permute.xlu0 %400
      %402 = vrot.lane.b32.xlu0 %v288, 16
      %v403 = vpop.permute.xlu0 %402
      %404 = vrot.lane.b32.xlu0 %v287, 16
      %v405 = vpop.permute.xlu0 %404
      %vm406 = vcmask 130048
      %v407 = vsel %vm406, %v401, %v403
      %v408 = vsel %vm406, %v403, %v405
      %v410 = vsel %vm298, %v398, 0
      %v413 = vsel %vm298, %v399, 0
      %v416 = vsel %vm305, %v407, 0
      %v419 = vsel %vm305, %v408, 0
      %421 = vmatprep.subr.bf16.mxu0 0
      %422 = vmatpush1.bf16.msra.mxu0 0
      %423 = vmatprep.subr.bf16.mxu0 0
      %424 = vmatpush1.bf16.msra.mxu0 0
      %425 = vmatprep.subr.bf16.mxu0 0
      %426 = vmatpush1.bf16.msra.mxu0 0
      %427 = vmatprep.subr.bf16.mxu0 0
      %428 = vmatpush1.bf16.msra.mxu0 0
      %429 = vmatprep.subr.bf16.mxu0 0
      %430 = vmatpush1.bf16.msra.mxu0 0
      %431 = vmatprep.subr.bf16.mxu0 0
      %432 = vmatpush1.bf16.msra.mxu0 0
      %433 = vmatprep.subr.bf16.mxu0 0
      %434 = vmatpush1.bf16.msra.mxu0 0
      %435 = vmatprep.subr.bf16.mxu0 %v419
      %436 = vmatpush1.bf16.msra.mxu0 %v416
      %437 = vmatprep.subr.bf16.mxu0 0
      %438 = vmatpush2.bf16.msra.mxu0 0
      %439 = vmatprep.subr.bf16.mxu0 0
      %440 = vmatpush2.bf16.msra.mxu0 0
      %441 = vmatprep.subr.bf16.mxu0 0
      %442 = vmatpush2.bf16.msra.mxu0 0
      %443 = vmatprep.subr.bf16.mxu0 0
      %444 = vmatpush2.bf16.msra.mxu0 0
      %445 = vmatprep.subr.bf16.mxu0 0
      %446 = vmatpush2.bf16.msra.mxu0 0
      %447 = vmatprep.subr.bf16.mxu0 0
      %448 = vmatpush2.bf16.msra.mxu0 0
      %449 = vmatprep.subr.bf16.mxu0 0
      %450 = vmatpush2.bf16.msra.mxu0 0
      %451 = vmatprep.subr.bf16.mxu0 0
      %452 = vmatpush2.bf16.msra.mxu0 0
      %453 = vmatprep.mubr.bf16.mxu0 0
      %454 = vmatmul.mubr.bf16.gmra.mxu0 %v410
      %v455 = vpop.f32.mrf.mxu0
      %v456 = vadd.f32 0.0, %v455
      %v457 = vpop.f32.mrf.mxu0
      %v458 = vadd.f32 0.0, %v457
      %v459 = vpop.f32.mrf.mxu0
      %v460 = vadd.f32 0.0, %v459
      %v461 = vpop.f32.mrf.mxu0
      %v462 = vadd.f32 0.0, %v461
      %463 = vmatprep.mubr.bf16.mxu0 0
      %464 = vmatmul.mubr.bf16.gmra.mxu0 %v413
      %v465 = vpop.f32.mrf.mxu0
      %v466 = vadd.f32 0.0, %v465
      %v467 = vpop.f32.mrf.mxu0
      %v468 = vadd.f32 0.0, %v467
      %v469 = vpop.f32.mrf.mxu0
      %v470 = vadd.f32 0.0, %v469
      %v471 = vpop.f32.mrf.mxu0
      %v472 = vadd.f32 0.0, %v471
      %473 = vdwg.mxu0
      %v474 = vadd.f32 %v377, %v456
      %v475 = vadd.f32 %v378, %v458
      %v476 = vadd.f32 %v379, %v460
      %v477 = vadd.f32 %v380, %v462
      %v478 = vadd.f32 %v381, %v466
      %v479 = vadd.f32 %v382, %v468
      %v480 = vadd.f32 %v383, %v470
      %v481 = vadd.f32 %v384, %v472
      %s482 = scalar_lea.vmem %s1, 32
      %v483 = vld [vmem:[%s482] sm:$0xf]
      %v484 = vld [vmem:[%s482 + $0x4] sm:$0xf]
      %v485 = vld [vmem:[%s482 + $0x8] sm:$0xf]
      %v486 = vld [vmem:[%s482 + $0xc] sm:$0xf]
      %v491 = vunpack.c.l.b16 %v483
      %v492 = vunpack.c.l.b16 %v484
      %v493 = vunpack.c.l.b16 %v485
      %v494 = vunpack.c.l.b16 %v486
      %v495 = vpack.c.b16 %v492, %v491
      %v496 = vpack.c.b16 %v494, %v493
      %497 = vrot.lane.b32.xlu0 %v280, 15
      %v498 = vpop.permute.xlu0 %497
      %499 = vrot.lane.b32.xlu0 %v288, 15
      %v500 = vpop.permute.xlu0 %499
      %501 = vrot.lane.b32.xlu0 %v287, 15
      %v502 = vpop.permute.xlu0 %501
      %vm503 = vcmask 121856
      %v504 = vsel %vm503, %v498, %v500
      %v505 = vsel %vm503, %v500, %v502
      %v507 = vsel %vm298, %v495, 0
      %v510 = vsel %vm298, %v496, 0
      %v513 = vsel %vm305, %v504, 0
      %v516 = vsel %vm305, %v505, 0
      %518 = vmatprep.subr.bf16.mxu0 0
      %519 = vmatpush1.bf16.msra.mxu0 0
      %520 = vmatprep.subr.bf16.mxu0 0
      %521 = vmatpush1.bf16.msra.mxu0 0
      %522 = vmatprep.subr.bf16.mxu0 0
      %523 = vmatpush1.bf16.msra.mxu0 0
      %524 = vmatprep.subr.bf16.mxu0 0
      %525 = vmatpush1.bf16.msra.mxu0 0
      %526 = vmatprep.subr.bf16.mxu0 0
      %527 = vmatpush1.bf16.msra.mxu0 0
      %528 = vmatprep.subr.bf16.mxu0 0
      %529 = vmatpush1.bf16.msra.mxu0 0
      %530 = vmatprep.subr.bf16.mxu0 0
      %531 = vmatpush1.bf16.msra.mxu0 0
      %532 = vmatprep.subr.bf16.mxu0 %v516
      %533 = vmatpush1.bf16.msra.mxu0 %v513
      %534 = vmatprep.subr.bf16.mxu0 0
      %535 = vmatpush2.bf16.msra.mxu0 0
      %536 = vmatprep.subr.bf16.mxu0 0
      %537 = vmatpush2.bf16.msra.mxu0 0
      %538 = vmatprep.subr.bf16.mxu0 0
      %539 = vmatpush2.bf16.msra.mxu0 0
      %540 = vmatprep.subr.bf16.mxu0 0
      %541 = vmatpush2.bf16.msra.mxu0 0
      %542 = vmatprep.subr.bf16.mxu0 0
      %543 = vmatpush2.bf16.msra.mxu0 0
      %544 = vmatprep.subr.bf16.mxu0 0
      %545 = vmatpush2.bf16.msra.mxu0 0
      %546 = vmatprep.subr.bf16.mxu0 0
      %547 = vmatpush2.bf16.msra.mxu0 0
      %548 = vmatprep.subr.bf16.mxu0 0
      %549 = vmatpush2.bf16.msra.mxu0 0
      %550 = vmatprep.mubr.bf16.mxu0 0
      %551 = vmatmul.mubr.bf16.gmra.mxu0 %v507
      %v552 = vpop.f32.mrf.mxu0
      %v553 = vadd.f32 0.0, %v552
      %v554 = vpop.f32.mrf.mxu0
      %v555 = vadd.f32 0.0, %v554
      %v556 = vpop.f32.mrf.mxu0
      %v557 = vadd.f32 0.0, %v556
      %v558 = vpop.f32.mrf.mxu0
      %v559 = vadd.f32 0.0, %v558
      %560 = vmatprep.mubr.bf16.mxu0 0
      %561 = vmatmul.mubr.bf16.gmra.mxu0 %v510
      %v562 = vpop.f32.mrf.mxu0
      %v563 = vadd.f32 0.0, %v562
      %v564 = vpop.f32.mrf.mxu0
      %v565 = vadd.f32 0.0, %v564
      %v566 = vpop.f32.mrf.mxu0
      %v567 = vadd.f32 0.0, %v566
      %v568 = vpop.f32.mrf.mxu0
      %v569 = vadd.f32 0.0, %v568
      %570 = vdwg.mxu0
      %v571 = vsel %vm255, 1, 0
      %v572 = vsel %vm256, 1, 0
      %vm573 = vcmp.eq.s32.totalorder %v571, 1
      %vm574 = vcmp.eq.s32.totalorder %v572, 1
      %v575 = vsel %vm573, %v553, 0.0
      %v576 = vsel %vm574, %v555, 0.0
      %v577 = vsel %vm573, %v557, 0.0
      %v578 = vsel %vm574, %v559, 0.0
      %v579 = vsel %vm573, %v563, 0.0
      %v580 = vsel %vm574, %v565, 0.0
      %v581 = vsel %vm573, %v567, 0.0
      %v582 = vsel %vm574, %v569, 0.0
      %v583 = vadd.f32 %v474, %v575
      %v584 = vadd.f32 %v475, %v576
      %v585 = vadd.f32 %v476, %v577
      %v586 = vadd.f32 %v477, %v578
      %v587 = vadd.f32 %v478, %v579
      %v588 = vadd.f32 %v479, %v580
      %v589 = vadd.f32 %v480, %v581
      %v590 = vadd.f32 %v481, %v582
      %s591 = scalar_lea.vmem %s1, 48
      %v592 = vld [vmem:[%s591] sm:$0xf]
      %v593 = vld [vmem:[%s591 + $0x4] sm:$0xf]
      %v594 = vld [vmem:[%s591 + $0x8] sm:$0xf]
      %v595 = vld [vmem:[%s591 + $0xc] sm:$0xf]
      %v600 = vunpack.c.l.b16 %v592
      %v601 = vunpack.c.l.b16 %v593
      %v602 = vunpack.c.l.b16 %v594
      %v603 = vunpack.c.l.b16 %v595
      %v604 = vpack.c.b16 %v601, %v600
      %v605 = vpack.c.b16 %v603, %v602
      %606 = vrot.lane.b32.xlu0 %v280, 1
      %v607 = vpop.permute.xlu0 %606
      %608 = vrot.lane.b32.xlu0 %v288, 1
      %v609 = vpop.permute.xlu0 %608
      %610 = vrot.lane.b32.xlu0 %v287, 1
      %v611 = vpop.permute.xlu0 %610
      %vm612 = vcmask 7168
      %v613 = vsel %vm612, %v607, %v609
      %v614 = vsel %vm612, %v609, %v611
      %v616 = vsel %vm298, %v604, 0
      %v619 = vsel %vm298, %v605, 0
      %v622 = vsel %vm305, %v613, 0
      %v625 = vsel %vm305, %v614, 0
      %627 = vmatprep.subr.bf16.mxu0 0
      %628 = vmatpush1.bf16.msra.mxu0 0
      %629 = vmatprep.subr.bf16.mxu0 0
      %630 = vmatpush1.bf16.msra.mxu0 0
      %631 = vmatprep.subr.bf16.mxu0 0
      %632 = vmatpush1.bf16.msra.mxu0 0
      %633 = vmatprep.subr.bf16.mxu0 0
      %634 = vmatpush1.bf16.msra.mxu0 0
      %635 = vmatprep.subr.bf16.mxu0 0
      %636 = vmatpush1.bf16.msra.mxu0 0
      %637 = vmatprep.subr.bf16.mxu0 0
      %638 = vmatpush1.bf16.msra.mxu0 0
      %639 = vmatprep.subr.bf16.mxu0 0
      %640 = vmatpush1.bf16.msra.mxu0 0
      %641 = vmatprep.subr.bf16.mxu0 %v625
      %642 = vmatpush1.bf16.msra.mxu0 %v622
      %643 = vmatprep.subr.bf16.mxu0 0
      %644 = vmatpush2.bf16.msra.mxu0 0
      %645 = vmatprep.subr.bf16.mxu0 0
      %646 = vmatpush2.bf16.msra.mxu0 0
      %647 = vmatprep.subr.bf16.mxu0 0
      %648 = vmatpush2.bf16.msra.mxu0 0
      %649 = vmatprep.subr.bf16.mxu0 0
      %650 = vmatpush2.bf16.msra.mxu0 0
      %651 = vmatprep.subr.bf16.mxu0 0
      %652 = vmatpush2.bf16.msra.mxu0 0
      %653 = vmatprep.subr.bf16.mxu0 0
      %654 = vmatpush2.bf16.msra.mxu0 0
      %655 = vmatprep.subr.bf16.mxu0 0
      %656 = vmatpush2.bf16.msra.mxu0 0
      %657 = vmatprep.subr.bf16.mxu0 0
      %658 = vmatpush2.bf16.msra.mxu0 0
      %659 = vmatprep.mubr.bf16.mxu0 0
      %660 = vmatmul.mubr.bf16.gmra.mxu0 %v616
      %v661 = vpop.f32.mrf.mxu0
      %v662 = vadd.f32 0.0, %v661
      %v663 = vpop.f32.mrf.mxu0
      %v664 = vadd.f32 0.0, %v663
      %v665 = vpop.f32.mrf.mxu0
      %v666 = vadd.f32 0.0, %v665
      %v667 = vpop.f32.mrf.mxu0
      %v668 = vadd.f32 0.0, %v667
      %669 = vmatprep.mubr.bf16.mxu0 0
      %670 = vmatmul.mubr.bf16.gmra.mxu0 %v619
      %v671 = vpop.f32.mrf.mxu0
      %v672 = vadd.f32 0.0, %v671
      %v673 = vpop.f32.mrf.mxu0
      %v674 = vadd.f32 0.0, %v673
      %v675 = vpop.f32.mrf.mxu0
      %v676 = vadd.f32 0.0, %v675
      %v677 = vpop.f32.mrf.mxu0
      %v678 = vadd.f32 0.0, %v677
      %679 = vdwg.mxu0
      %v680 = vsel %vm367, %v662, 0.0
      %v681 = vsel %vm368, %v664, 0.0
      %v682 = vsel %vm367, %v666, 0.0
      %v683 = vsel %vm368, %v668, 0.0
      %v684 = vsel %vm367, %v672, 0.0
      %v685 = vsel %vm368, %v674, 0.0
      %v686 = vsel %vm367, %v676, 0.0
      %v687 = vsel %vm368, %v678, 0.0
      %v688 = vadd.f32 %v583, %v680
      %v689 = vadd.f32 %v584, %v681
      %v690 = vadd.f32 %v585, %v682
      %v691 = vadd.f32 %v586, %v683
      %v692 = vadd.f32 %v587, %v684
      %v693 = vadd.f32 %v588, %v685
      %v694 = vadd.f32 %v589, %v686
      %v695 = vadd.f32 %v590, %v687
      %s696 = scalar_lea.vmem %s1, 64
      %v697 = vld [vmem:[%s696] sm:$0xf]
      %v698 = vld [vmem:[%s696 + $0x4] sm:$0xf]
      %v699 = vld [vmem:[%s696 + $0x8] sm:$0xf]
      %v700 = vld [vmem:[%s696 + $0xc] sm:$0xf]
      %v705 = vunpack.c.l.b16 %v697
      %v706 = vunpack.c.l.b16 %v698
      %v707 = vunpack.c.l.b16 %v699
      %v708 = vunpack.c.l.b16 %v700
      %v709 = vpack.c.b16 %v706, %v705
      %v710 = vpack.c.b16 %v708, %v707
      %v712 = vsel %vm298, %v709, 0
      %v715 = vsel %vm298, %v710, 0
      %v718 = vsel %vm305, %v288, 0
      %v721 = vsel %vm305, %v287, 0
      %723 = vmatprep.subr.bf16.mxu0 0
      %724 = vmatpush1.bf16.msra.mxu0 0
      %725 = vmatprep.subr.bf16.mxu0 0
      %726 = vmatpush1.bf16.msra.mxu0 0
      %727 = vmatprep.subr.bf16.mxu0 0
      %728 = vmatpush1.bf16.msra.mxu0 0
      %729 = vmatprep.subr.bf16.mxu0 0
      %730 = vmatpush1.bf16.msra.mxu0 0
      %731 = vmatprep.subr.bf16.mxu0 0
      %732 = vmatpush1.bf16.msra.mxu0 0
      %733 = vmatprep.subr.bf16.mxu0 0
      %734 = vmatpush1.bf16.msra.mxu0 0
      %735 = vmatprep.subr.bf16.mxu0 0
      %736 = vmatpush1.bf16.msra.mxu0 0
      %737 = vmatprep.subr.bf16.mxu0 %v721
      %738 = vmatpush1.bf16.msra.mxu0 %v718
      %739 = vmatprep.subr.bf16.mxu0 0
      %740 = vmatpush2.bf16.msra.mxu0 0
      %741 = vmatprep.subr.bf16.mxu0 0
      %742 = vmatpush2.bf16.msra.mxu0 0
      %743 = vmatprep.subr.bf16.mxu0 0
      %744 = vmatpush2.bf16.msra.mxu0 0
      %745 = vmatprep.subr.bf16.mxu0 0
      %746 = vmatpush2.bf16.msra.mxu0 0
      %747 = vmatprep.subr.bf16.mxu0 0
      %748 = vmatpush2.bf16.msra.mxu0 0
      %749 = vmatprep.subr.bf16.mxu0 0
      %750 = vmatpush2.bf16.msra.mxu0 0
      %751 = vmatprep.subr.bf16.mxu0 0
      %752 = vmatpush2.bf16.msra.mxu0 0
      %753 = vmatprep.subr.bf16.mxu0 0
      %754 = vmatpush2.bf16.msra.mxu0 0
      %755 = vmatprep.mubr.bf16.mxu0 0
      %756 = vmatmul.mubr.bf16.gmra.mxu0 %v712
      %v757 = vpop.f32.mrf.mxu0
      %v758 = vadd.f32 0.0, %v757
      %v759 = vpop.f32.mrf.mxu0
      %v760 = vadd.f32 0.0, %v759
      %v761 = vpop.f32.mrf.mxu0
      %v762 = vadd.f32 0.0, %v761
      %v763 = vpop.f32.mrf.mxu0
      %v764 = vadd.f32 0.0, %v763
      %765 = vmatprep.mubr.bf16.mxu0 0
      %766 = vmatmul.mubr.bf16.gmra.mxu0 %v715
      %v767 = vpop.f32.mrf.mxu0
      %v768 = vadd.f32 0.0, %v767
      %v769 = vpop.f32.mrf.mxu0
      %v770 = vadd.f32 0.0, %v769
      %v771 = vpop.f32.mrf.mxu0
      %v772 = vadd.f32 0.0, %v771
      %v773 = vpop.f32.mrf.mxu0
      %v774 = vadd.f32 0.0, %v773
      %775 = vdwg.mxu0
      %v776 = vadd.f32 %v688, %v758
      %v777 = vadd.f32 %v689, %v760
      %v778 = vadd.f32 %v690, %v762
      %v779 = vadd.f32 %v691, %v764
      %v780 = vadd.f32 %v692, %v768
      %v781 = vadd.f32 %v693, %v770
      %v782 = vadd.f32 %v694, %v772
      %v783 = vadd.f32 %v695, %v774
      %s784 = scalar_lea.vmem %s1, 80
      %v785 = vld [vmem:[%s784] sm:$0xf]
      %v786 = vld [vmem:[%s784 + $0x4] sm:$0xf]
      %v787 = vld [vmem:[%s784 + $0x8] sm:$0xf]
      %v788 = vld [vmem:[%s784 + $0xc] sm:$0xf]
      %v793 = vunpack.c.l.b16 %v785
      %v794 = vunpack.c.l.b16 %v786
      %v795 = vunpack.c.l.b16 %v787
      %v796 = vunpack.c.l.b16 %v788
      %v797 = vpack.c.b16 %v794, %v793
      %v798 = vpack.c.b16 %v796, %v795
      %v799 = vcombine.high %v287, %v287
      %800 = vrot.lane.b32.xlu0 %v288, 127
      %v801 = vpop.permute.xlu0 %800
      %802 = vrot.lane.b32.xlu0 %v287, 127
      %v803 = vpop.permute.xlu0 %802
      %804 = vrot.lane.b32.xlu0 %v799, 127
      %v805 = vpop.permute.xlu0 %804
      %vm806 = vcmask 1039360
      %v807 = vsel %vm806, %v801, %v803
      %v808 = vsel %vm806, %v803, %v805
      %v810 = vsel %vm298, %v797, 0
      %v813 = vsel %vm298, %v798, 0
      %v816 = vsel %vm305, %v807, 0
      %v819 = vsel %vm305, %v808, 0
      %821 = vmatprep.subr.bf16.mxu0 0
      %822 = vmatpush1.bf16.msra.mxu0 0
      %823 = vmatprep.subr.bf16.mxu0 0
      %824 = vmatpush1.bf16.msra.mxu0 0
      %825 = vmatprep.subr.bf16.mxu0 0
      %826 = vmatpush1.bf16.msra.mxu0 0
      %827 = vmatprep.subr.bf16.mxu0 0
      %828 = vmatpush1.bf16.msra.mxu0 0
      %829 = vmatprep.subr.bf16.mxu0 0
      %830 = vmatpush1.bf16.msra.mxu0 0
      %831 = vmatprep.subr.bf16.mxu0 0
      %832 = vmatpush1.bf16.msra.mxu0 0
      %833 = vmatprep.subr.bf16.mxu0 0
      %834 = vmatpush1.bf16.msra.mxu0 0
      %835 = vmatprep.subr.bf16.mxu0 %v819
      %836 = vmatpush1.bf16.msra.mxu0 %v816
      %837 = vmatprep.subr.bf16.mxu0 0
      %838 = vmatpush2.bf16.msra.mxu0 0
      %839 = vmatprep.subr.bf16.mxu0 0
      %840 = vmatpush2.bf16.msra.mxu0 0
      %841 = vmatprep.subr.bf16.mxu0 0
      %842 = vmatpush2.bf16.msra.mxu0 0
      %843 = vmatprep.subr.bf16.mxu0 0
      %844 = vmatpush2.bf16.msra.mxu0 0
      %845 = vmatprep.subr.bf16.mxu0 0
      %846 = vmatpush2.bf16.msra.mxu0 0
      %847 = vmatprep.subr.bf16.mxu0 0
      %848 = vmatpush2.bf16.msra.mxu0 0
      %849 = vmatprep.subr.bf16.mxu0 0
      %850 = vmatpush2.bf16.msra.mxu0 0
      %851 = vmatprep.subr.bf16.mxu0 0
      %852 = vmatpush2.bf16.msra.mxu0 0
      %853 = vmatprep.mubr.bf16.mxu0 0
      %854 = vmatmul.mubr.bf16.gmra.mxu0 %v810
      %v855 = vpop.f32.mrf.mxu0
      %v856 = vadd.f32 0.0, %v855
      %v857 = vpop.f32.mrf.mxu0
      %v858 = vadd.f32 0.0, %v857
      %v859 = vpop.f32.mrf.mxu0
      %v860 = vadd.f32 0.0, %v859
      %v861 = vpop.f32.mrf.mxu0
      %v862 = vadd.f32 0.0, %v861
      %863 = vmatprep.mubr.bf16.mxu0 0
      %864 = vmatmul.mubr.bf16.gmra.mxu0 %v813
      %v865 = vpop.f32.mrf.mxu0
      %v866 = vadd.f32 0.0, %v865
      %v867 = vpop.f32.mrf.mxu0
      %v868 = vadd.f32 0.0, %v867
      %v869 = vpop.f32.mrf.mxu0
      %v870 = vadd.f32 0.0, %v869
      %v871 = vpop.f32.mrf.mxu0
      %v872 = vadd.f32 0.0, %v871
      %873 = vdwg.mxu0
      %v874 = vsel %vm573, %v856, 0.0
      %v875 = vsel %vm574, %v858, 0.0
      %v876 = vsel %vm573, %v860, 0.0
      %v877 = vsel %vm574, %v862, 0.0
      %v878 = vsel %vm573, %v866, 0.0
      %v879 = vsel %vm574, %v868, 0.0
      %v880 = vsel %vm573, %v870, 0.0
      %v881 = vsel %vm574, %v872, 0.0
      %v882 = vadd.f32 %v776, %v874
      %v883 = vadd.f32 %v777, %v875
      %v884 = vadd.f32 %v778, %v876
      %v885 = vadd.f32 %v779, %v877
      %v886 = vadd.f32 %v780, %v878
      %v887 = vadd.f32 %v781, %v879
      %v888 = vadd.f32 %v782, %v880
      %v889 = vadd.f32 %v783, %v881
      %s890 = scalar_lea.vmem %s1, 96
      %v891 = vld [vmem:[%s890] sm:$0xf]
      %v892 = vld [vmem:[%s890 + $0x4] sm:$0xf]
      %v893 = vld [vmem:[%s890 + $0x8] sm:$0xf]
      %v894 = vld [vmem:[%s890 + $0xc] sm:$0xf]
      %v899 = vunpack.c.l.b16 %v891
      %v900 = vunpack.c.l.b16 %v892
      %v901 = vunpack.c.l.b16 %v893
      %v902 = vunpack.c.l.b16 %v894
      %v903 = vpack.c.b16 %v900, %v899
      %v904 = vpack.c.b16 %v902, %v901
      %905 = vrot.lane.b32.xlu0 %v288, 113
      %v906 = vpop.permute.xlu0 %905
      %907 = vrot.lane.b32.xlu0 %v287, 113
      %v908 = vpop.permute.xlu0 %907
      %909 = vrot.lane.b32.xlu0 %v799, 113
      %v910 = vpop.permute.xlu0 %909
      %vm911 = vcmask 924672
      %v912 = vsel %vm911, %v906, %v908
      %v913 = vsel %vm911, %v908, %v910
      %v915 = vsel %vm298, %v903, 0
      %v918 = vsel %vm298, %v904, 0
      %v921 = vsel %vm305, %v912, 0
      %v924 = vsel %vm305, %v913, 0
      %926 = vmatprep.subr.bf16.mxu0 0
      %927 = vmatpush1.bf16.msra.mxu0 0
      %928 = vmatprep.subr.bf16.mxu0 0
      %929 = vmatpush1.bf16.msra.mxu0 0
      %930 = vmatprep.subr.bf16.mxu0 0
      %931 = vmatpush1.bf16.msra.mxu0 0
      %932 = vmatprep.subr.bf16.mxu0 0
      %933 = vmatpush1.bf16.msra.mxu0 0
      %934 = vmatprep.subr.bf16.mxu0 0
      %935 = vmatpush1.bf16.msra.mxu0 0
      %936 = vmatprep.subr.bf16.mxu0 0
      %937 = vmatpush1.bf16.msra.mxu0 0
      %938 = vmatprep.subr.bf16.mxu0 0
      %939 = vmatpush1.bf16.msra.mxu0 0
      %940 = vmatprep.subr.bf16.mxu0 %v924
      %941 = vmatpush1.bf16.msra.mxu0 %v921
      %942 = vmatprep.subr.bf16.mxu0 0
      %943 = vmatpush2.bf16.msra.mxu0 0
      %944 = vmatprep.subr.bf16.mxu0 0
      %945 = vmatpush2.bf16.msra.mxu0 0
      %946 = vmatprep.subr.bf16.mxu0 0
      %947 = vmatpush2.bf16.msra.mxu0 0
      %948 = vmatprep.subr.bf16.mxu0 0
      %949 = vmatpush2.bf16.msra.mxu0 0
      %950 = vmatprep.subr.bf16.mxu0 0
      %951 = vmatpush2.bf16.msra.mxu0 0
      %952 = vmatprep.subr.bf16.mxu0 0
      %953 = vmatpush2.bf16.msra.mxu0 0
      %954 = vmatprep.subr.bf16.mxu0 0
      %955 = vmatpush2.bf16.msra.mxu0 0
      %956 = vmatprep.subr.bf16.mxu0 0
      %957 = vmatpush2.bf16.msra.mxu0 0
      %958 = vmatprep.mubr.bf16.mxu0 0
      %959 = vmatmul.mubr.bf16.gmra.mxu0 %v915
      %v960 = vpop.f32.mrf.mxu0
      %v961 = vadd.f32 0.0, %v960
      %v962 = vpop.f32.mrf.mxu0
      %v963 = vadd.f32 0.0, %v962
      %v964 = vpop.f32.mrf.mxu0
      %v965 = vadd.f32 0.0, %v964
      %v966 = vpop.f32.mrf.mxu0
      %v967 = vadd.f32 0.0, %v966
      %968 = vmatprep.mubr.bf16.mxu0 0
      %969 = vmatmul.mubr.bf16.gmra.mxu0 %v918
      %v970 = vpop.f32.mrf.mxu0
      %v971 = vadd.f32 0.0, %v970
      %v972 = vpop.f32.mrf.mxu0
      %v973 = vadd.f32 0.0, %v972
      %v974 = vpop.f32.mrf.mxu0
      %v975 = vadd.f32 0.0, %v974
      %v976 = vpop.f32.mrf.mxu0
      %v977 = vadd.f32 0.0, %v976
      %978 = vdwg.mxu0
      %v979 = vsel %vm367, %v961, 0.0
      %v980 = vsel %vm368, %v963, 0.0
      %v981 = vsel %vm367, %v965, 0.0
      %v982 = vsel %vm368, %v967, 0.0
      %v983 = vsel %vm367, %v971, 0.0
      %v984 = vsel %vm368, %v973, 0.0
      %v985 = vsel %vm367, %v975, 0.0
      %v986 = vsel %vm368, %v977, 0.0
      %v987 = vadd.f32 %v882, %v979
      %v988 = vadd.f32 %v883, %v980
      %v989 = vadd.f32 %v884, %v981
      %v990 = vadd.f32 %v885, %v982
      %v991 = vadd.f32 %v886, %v983
      %v992 = vadd.f32 %v887, %v984
      %v993 = vadd.f32 %v888, %v985
      %v994 = vadd.f32 %v889, %v986
      %s995 = scalar_lea.vmem %s1, 112
      %v996 = vld [vmem:[%s995] sm:$0xf]
      %v997 = vld [vmem:[%s995 + $0x4] sm:$0xf]
      %v998 = vld [vmem:[%s995 + $0x8] sm:$0xf]
      %v999 = vld [vmem:[%s995 + $0xc] sm:$0xf]
      %v1004 = vunpack.c.l.b16 %v996
      %v1005 = vunpack.c.l.b16 %v997
      %v1006 = vunpack.c.l.b16 %v998
      %v1007 = vunpack.c.l.b16 %v999
      %v1008 = vpack.c.b16 %v1005, %v1004
      %v1009 = vpack.c.b16 %v1007, %v1006
      %1010 = vrot.lane.b32.xlu0 %v288, 112
      %v1011 = vpop.permute.xlu0 %1010
      %1012 = vrot.lane.b32.xlu0 %v287, 112
      %v1013 = vpop.permute.xlu0 %1012
      %1014 = vrot.lane.b32.xlu0 %v799, 112
      %v1015 = vpop.permute.xlu0 %1014
      %vm1016 = vcmask 916480
      %v1017 = vsel %vm1016, %v1011, %v1013
      %v1018 = vsel %vm1016, %v1013, %v1015
      %v1020 = vsel %vm298, %v1008, 0
      %v1023 = vsel %vm298, %v1009, 0
      %v1026 = vsel %vm305, %v1017, 0
      %v1029 = vsel %vm305, %v1018, 0
      %1031 = vmatprep.subr.bf16.mxu0 0
      %1032 = vmatpush1.bf16.msra.mxu0 0
      %1033 = vmatprep.subr.bf16.mxu0 0
      %1034 = vmatpush1.bf16.msra.mxu0 0
      %1035 = vmatprep.subr.bf16.mxu0 0
      %1036 = vmatpush1.bf16.msra.mxu0 0
      %1037 = vmatprep.subr.bf16.mxu0 0
      %1038 = vmatpush1.bf16.msra.mxu0 0
      %1039 = vmatprep.subr.bf16.mxu0 0
      %1040 = vmatpush1.bf16.msra.mxu0 0
      %1041 = vmatprep.subr.bf16.mxu0 0
      %1042 = vmatpush1.bf16.msra.mxu0 0
      %1043 = vmatprep.subr.bf16.mxu0 0
      %1044 = vmatpush1.bf16.msra.mxu0 0
      %1045 = vmatprep.subr.bf16.mxu0 %v1029
      %1046 = vmatpush1.bf16.msra.mxu0 %v1026
      %1047 = vmatprep.subr.bf16.mxu0 0
      %1048 = vmatpush2.bf16.msra.mxu0 0
      %1049 = vmatprep.subr.bf16.mxu0 0
      %1050 = vmatpush2.bf16.msra.mxu0 0
      %1051 = vmatprep.subr.bf16.mxu0 0
      %1052 = vmatpush2.bf16.msra.mxu0 0
      %1053 = vmatprep.subr.bf16.mxu0 0
      %1054 = vmatpush2.bf16.msra.mxu0 0
      %1055 = vmatprep.subr.bf16.mxu0 0
      %1056 = vmatpush2.bf16.msra.mxu0 0
      %1057 = vmatprep.subr.bf16.mxu0 0
      %1058 = vmatpush2.bf16.msra.mxu0 0
      %1059 = vmatprep.subr.bf16.mxu0 0
      %1060 = vmatpush2.bf16.msra.mxu0 0
      %1061 = vmatprep.subr.bf16.mxu0 0
      %1062 = vmatpush2.bf16.msra.mxu0 0
      %1063 = vmatprep.mubr.bf16.mxu0 0
      %1064 = vmatmul.mubr.bf16.gmra.mxu0 %v1020
      %v1065 = vpop.f32.mrf.mxu0
      %v1066 = vadd.f32 0.0, %v1065
      %v1067 = vpop.f32.mrf.mxu0
      %v1068 = vadd.f32 0.0, %v1067
      %v1069 = vpop.f32.mrf.mxu0
      %v1070 = vadd.f32 0.0, %v1069
      %v1071 = vpop.f32.mrf.mxu0
      %v1072 = vadd.f32 0.0, %v1071
      %1073 = vmatprep.mubr.bf16.mxu0 0
      %1074 = vmatmul.mubr.bf16.gmra.mxu0 %v1023
      %v1075 = vpop.f32.mrf.mxu0
      %v1076 = vadd.f32 0.0, %v1075
      %v1077 = vpop.f32.mrf.mxu0
      %v1078 = vadd.f32 0.0, %v1077
      %v1079 = vpop.f32.mrf.mxu0
      %v1080 = vadd.f32 0.0, %v1079
      %v1081 = vpop.f32.mrf.mxu0
      %v1082 = vadd.f32 0.0, %v1081
      %1083 = vdwg.mxu0
      %v1084 = vadd.f32 %v987, %v1066
      %v1085 = vadd.f32 %v988, %v1068
      %v1086 = vadd.f32 %v989, %v1070
      %v1087 = vadd.f32 %v990, %v1072
      %v1088 = vadd.f32 %v991, %v1076
      %v1089 = vadd.f32 %v992, %v1078
      %v1090 = vadd.f32 %v993, %v1080
      %v1091 = vadd.f32 %v994, %v1082
      %s1092 = scalar_lea.vmem %s1, 128
      %v1093 = vld [vmem:[%s1092] sm:$0xf]
      %v1094 = vld [vmem:[%s1092 + $0x4] sm:$0xf]
      %v1095 = vld [vmem:[%s1092 + $0x8] sm:$0xf]
      %v1096 = vld [vmem:[%s1092 + $0xc] sm:$0xf]
      %v1101 = vunpack.c.l.b16 %v1093
      %v1102 = vunpack.c.l.b16 %v1094
      %v1103 = vunpack.c.l.b16 %v1095
      %v1104 = vunpack.c.l.b16 %v1096
      %v1105 = vpack.c.b16 %v1102, %v1101
      %v1106 = vpack.c.b16 %v1104, %v1103
      %1107 = vrot.lane.b32.xlu0 %v288, 111
      %v1108 = vpop.permute.xlu0 %1107
      %1109 = vrot.lane.b32.xlu0 %v287, 111
      %v1110 = vpop.permute.xlu0 %1109
      %1111 = vrot.lane.b32.xlu0 %v799, 111
      %v1112 = vpop.permute.xlu0 %1111
      %vm1113 = vcmask 908288
      %v1114 = vsel %vm1113, %v1108, %v1110
      %v1115 = vsel %vm1113, %v1110, %v1112
      %v1117 = vsel %vm298, %v1105, 0
      %v1120 = vsel %vm298, %v1106, 0
      %v1123 = vsel %vm305, %v1114, 0
      %v1126 = vsel %vm305, %v1115, 0
      %1128 = vmatprep.subr.bf16.mxu0 0
      %1129 = vmatpush1.bf16.msra.mxu0 0
      %1130 = vmatprep.subr.bf16.mxu0 0
      %1131 = vmatpush1.bf16.msra.mxu0 0
      %1132 = vmatprep.subr.bf16.mxu0 0
      %1133 = vmatpush1.bf16.msra.mxu0 0
      %1134 = vmatprep.subr.bf16.mxu0 0
      %1135 = vmatpush1.bf16.msra.mxu0 0
      %1136 = vmatprep.subr.bf16.mxu0 0
      %1137 = vmatpush1.bf16.msra.mxu0 0
      %1138 = vmatprep.subr.bf16.mxu0 0
      %1139 = vmatpush1.bf16.msra.mxu0 0
      %1140 = vmatprep.subr.bf16.mxu0 0
      %1141 = vmatpush1.bf16.msra.mxu0 0
      %1142 = vmatprep.subr.bf16.mxu0 %v1126
      %1143 = vmatpush1.bf16.msra.mxu0 %v1123
      %1144 = vmatprep.subr.bf16.mxu0 0
      %1145 = vmatpush2.bf16.msra.mxu0 0
      %1146 = vmatprep.subr.bf16.mxu0 0
      %1147 = vmatpush2.bf16.msra.mxu0 0
      %1148 = vmatprep.subr.bf16.mxu0 0
      %1149 = vmatpush2.bf16.msra.mxu0 0
      %1150 = vmatprep.subr.bf16.mxu0 0
      %1151 = vmatpush2.bf16.msra.mxu0 0
      %1152 = vmatprep.subr.bf16.mxu0 0
      %1153 = vmatpush2.bf16.msra.mxu0 0
      %1154 = vmatprep.subr.bf16.mxu0 0
      %1155 = vmatpush2.bf16.msra.mxu0 0
      %1156 = vmatprep.subr.bf16.mxu0 0
      %1157 = vmatpush2.bf16.msra.mxu0 0
      %1158 = vmatprep.subr.bf16.mxu0 0
      %1159 = vmatpush2.bf16.msra.mxu0 0
      %1160 = vmatprep.mubr.bf16.mxu0 0
      %1161 = vmatmul.mubr.bf16.gmra.mxu0 %v1117
      %v1162 = vpop.f32.mrf.mxu0
      %v1163 = vadd.f32 0.0, %v1162
      %v1164 = vpop.f32.mrf.mxu0
      %v1165 = vadd.f32 0.0, %v1164
      %v1166 = vpop.f32.mrf.mxu0
      %v1167 = vadd.f32 0.0, %v1166
      %v1168 = vpop.f32.mrf.mxu0
      %v1169 = vadd.f32 0.0, %v1168
      %1170 = vmatprep.mubr.bf16.mxu0 0
      %1171 = vmatmul.mubr.bf16.gmra.mxu0 %v1120
      %v1172 = vpop.f32.mrf.mxu0
      %v1173 = vadd.f32 0.0, %v1172
      %v1174 = vpop.f32.mrf.mxu0
      %v1175 = vadd.f32 0.0, %v1174
      %v1176 = vpop.f32.mrf.mxu0
      %v1177 = vadd.f32 0.0, %v1176
      %v1178 = vpop.f32.mrf.mxu0
      %v1179 = vadd.f32 0.0, %v1178
      %1180 = vdwg.mxu0
      %v1181 = vsel %vm573, %v1163, 0.0
      %v1182 = vsel %vm574, %v1165, 0.0
      %v1183 = vsel %vm573, %v1167, 0.0
      %v1184 = vsel %vm574, %v1169, 0.0
      %v1185 = vsel %vm573, %v1173, 0.0
      %v1186 = vsel %vm574, %v1175, 0.0
      %v1187 = vsel %vm573, %v1177, 0.0
      %v1188 = vsel %vm574, %v1179, 0.0
      %v1189 = vadd.f32 %v1084, %v1181
      %v1190 = vadd.f32 %v1085, %v1182
      %v1191 = vadd.f32 %v1086, %v1183
      %v1192 = vadd.f32 %v1087, %v1184
      %v1193 = vadd.f32 %v1088, %v1185
      %v1194 = vadd.f32 %v1089, %v1186
      %v1195 = vadd.f32 %v1090, %v1187
      %v1196 = vadd.f32 %v1091, %v1188
      %v1197 = vld [vmem:[%s3] sm:$0xff]
      %v1198 = vld [vmem:[%s3 + $0x8] sm:$0xff]
      %v1199 = vld [vmem:[%s3 + $0x10] sm:$0xff]
      %v1200 = vld [vmem:[%s3 + $0x18] sm:$0xff]
      %1202 = vset.pattern.permute.xlu0 0
      %1203 = vperm.xlu0 %1202, %v1197
      %v1204 = vpop.permute.xlu0 %1203
      %1207 = vset.pattern.permute.xlu0 0
      %1208 = vperm.xlu0 %1207, %v1198
      %v1209 = vpop.permute.xlu0 %1208
      %1212 = vset.pattern.permute.xlu0 0
      %1213 = vperm.xlu0 %1212, %v1199
      %v1214 = vpop.permute.xlu0 %1213
      %1217 = vset.pattern.permute.xlu0 0
      %1218 = vperm.xlu0 %1217, %v1200
      %v1219 = vpop.permute.xlu0 %1218
      %v1221 = vadd.f32 %v1189, %v1204
      %v1222 = vadd.f32 %v1190, %v1204
      %v1223 = vadd.f32 %v1191, %v1209
      %v1224 = vadd.f32 %v1192, %v1209
      %v1225 = vadd.f32 %v1193, %v1214
      %v1226 = vadd.f32 %v1194, %v1214
      %v1227 = vadd.f32 %v1195, %v1219
      %v1228 = vadd.f32 %v1196, %v1219
      %vm1229 = vcmp.gt.f32.partialorder %v1221, 20.0
      %vm1230 = vcmp.gt.f32.partialorder %v1222, 20.0
      %vm1231 = vcmp.gt.f32.partialorder %v1223, 20.0
      %vm1232 = vcmp.gt.f32.partialorder %v1224, 20.0
      %vm1233 = vcmp.gt.f32.partialorder %v1225, 20.0
      %vm1234 = vcmp.gt.f32.partialorder %v1226, 20.0
      %vm1235 = vcmp.gt.f32.partialorder %v1227, 20.0
      %vm1236 = vcmp.gt.f32.partialorder %v1228, 20.0
      %v1237 = vmul.f32 %v1221, 1.442695
      %v1238 = vpow.pop %v1237
      %v1239 = vmul.f32 %v1222, 1.442695
      %v1240 = vpow.pop %v1239
      %v1241 = vmul.f32 %v1223, 1.442695
      %v1242 = vpow.pop %v1241
      %v1243 = vmul.f32 %v1224, 1.442695
      %v1244 = vpow.pop %v1243
      %v1245 = vmul.f32 %v1225, 1.442695
      %v1246 = vpow.pop %v1245
      %v1247 = vmul.f32 %v1226, 1.442695
      %v1248 = vpow.pop %v1247
      %v1249 = vmul.f32 %v1227, 1.442695
      %v1250 = vpow.pop %v1249
      %v1251 = vmul.f32 %v1228, 1.442695
      %v1252 = vpow.pop %v1251
      %v1253 = vadd.f32 %v1238, 1.0
      %v1254 = vlog2.pop %v1253
      %v1255 = vmul.f32 %v1254, 0.6931472
      %v1256 = vmul.f32 -0.5, %v1238
      %v1257 = vadd.f32 %v1256, 1.0
      %v1258 = vmul.f32 %v1257, %v1238
      %v1259 = vand.u32 2147483647, %v1238
      %vm1260 = vcmp.lt.f32.partialorder %v1259, 0.0004427343
      %v1261 = vsel %vm1260, %v1258, %v1255
      %v1262 = vadd.f32 %v1240, 1.0
      %v1263 = vlog2.pop %v1262
      %v1264 = vmul.f32 %v1263, 0.6931472
      %v1265 = vmul.f32 -0.5, %v1240
      %v1266 = vadd.f32 %v1265, 1.0
      %v1267 = vmul.f32 %v1266, %v1240
      %v1268 = vand.u32 2147483647, %v1240
      %vm1269 = vcmp.lt.f32.partialorder %v1268, 0.0004427343
      %v1270 = vsel %vm1269, %v1267, %v1264
      %v1271 = vadd.f32 %v1242, 1.0
      %v1272 = vlog2.pop %v1271
      %v1273 = vmul.f32 %v1272, 0.6931472
      %v1274 = vmul.f32 -0.5, %v1242
      %v1275 = vadd.f32 %v1274, 1.0
      %v1276 = vmul.f32 %v1275, %v1242
      %v1277 = vand.u32 2147483647, %v1242
      %vm1278 = vcmp.lt.f32.partialorder %v1277, 0.0004427343
      %v1279 = vsel %vm1278, %v1276, %v1273
      %v1280 = vadd.f32 %v1244, 1.0
      %v1281 = vlog2.pop %v1280
      %v1282 = vmul.f32 %v1281, 0.6931472
      %v1283 = vmul.f32 -0.5, %v1244
      %v1284 = vadd.f32 %v1283, 1.0
      %v1285 = vmul.f32 %v1284, %v1244
      %v1286 = vand.u32 2147483647, %v1244
      %vm1287 = vcmp.lt.f32.partialorder %v1286, 0.0004427343
      %v1288 = vsel %vm1287, %v1285, %v1282
      %v1289 = vadd.f32 %v1246, 1.0
      %v1290 = vlog2.pop %v1289
      %v1291 = vmul.f32 %v1290, 0.6931472
      %v1292 = vmul.f32 -0.5, %v1246
      %v1293 = vadd.f32 %v1292, 1.0
      %v1294 = vmul.f32 %v1293, %v1246
      %v1295 = vand.u32 2147483647, %v1246
      %vm1296 = vcmp.lt.f32.partialorder %v1295, 0.0004427343
      %v1297 = vsel %vm1296, %v1294, %v1291
      %v1298 = vadd.f32 %v1248, 1.0
      %v1299 = vlog2.pop %v1298
      %v1300 = vmul.f32 %v1299, 0.6931472
      %v1301 = vmul.f32 -0.5, %v1248
      %v1302 = vadd.f32 %v1301, 1.0
      %v1303 = vmul.f32 %v1302, %v1248
      %v1304 = vand.u32 2147483647, %v1248
      %vm1305 = vcmp.lt.f32.partialorder %v1304, 0.0004427343
      %v1306 = vsel %vm1305, %v1303, %v1300
      %v1307 = vadd.f32 %v1250, 1.0
      %v1308 = vlog2.pop %v1307
      %v1309 = vmul.f32 %v1308, 0.6931472
      %v1310 = vmul.f32 -0.5, %v1250
      %v1311 = vadd.f32 %v1310, 1.0
      %v1312 = vmul.f32 %v1311, %v1250
      %v1313 = vand.u32 2147483647, %v1250
      %vm1314 = vcmp.lt.f32.partialorder %v1313, 0.0004427343
      %v1315 = vsel %vm1314, %v1312, %v1309
      %v1316 = vadd.f32 %v1252, 1.0
      %v1317 = vlog2.pop %v1316
      %v1318 = vmul.f32 %v1317, 0.6931472
      %v1319 = vmul.f32 -0.5, %v1252
      %v1320 = vadd.f32 %v1319, 1.0
      %v1321 = vmul.f32 %v1320, %v1252
      %v1322 = vand.u32 2147483647, %v1252
      %vm1323 = vcmp.lt.f32.partialorder %v1322, 0.0004427343
      %v1324 = vsel %vm1323, %v1321, %v1318
      %v1325 = vsel %vm1229, %v1221, %v1261
      %v1326 = vsel %vm1230, %v1222, %v1270
      %v1327 = vsel %vm1231, %v1223, %v1279
      %v1328 = vsel %vm1232, %v1224, %v1288
      %v1329 = vsel %vm1233, %v1225, %v1297
      %v1330 = vsel %vm1234, %v1226, %v1306
      %v1331 = vsel %vm1235, %v1227, %v1315
      %v1332 = vsel %vm1236, %v1228, %v1324
      %1333 = vst [vmem:[#allocation2] sm:$0xff] 0
      %1334 = vst [vmem:[#allocation2 + $0x8] sm:$0xff] 0
      %1335 = vst [vmem:[#allocation2 + $0x10] sm:$0xff] 0
      %1336 = vst [vmem:[#allocation2 + $0x18] sm:$0xff] 0
      %1337 = vst [vmem:[#allocation2 + $0x20] sm:$0xff] 0
      %1338 = vst [vmem:[#allocation2 + $0x28] sm:$0xff] 0
      %1339 = vst [vmem:[#allocation2 + $0x30] sm:$0xff] 0
      %1340 = vst [vmem:[#allocation2 + $0x38] sm:$0xff] 0
      %v1341 = vpack.c.bf16 %v1327, %v1325
      %v1342 = vpack.c.bf16 %v1328, %v1326
      %v1343 = vpack.c.bf16 %v1331, %v1329
      %v1344 = vpack.c.bf16 %v1332, %v1330
      %v1349 = vunpack.c.l.b16 %v1341
      %v1350 = vunpack.c.l.b16 %v1342
      %v1351 = vunpack.c.h.b16 %v1341
      %v1352 = vunpack.c.h.b16 %v1342
      %v1353 = vunpack.c.l.b16 %v1343
      %v1354 = vunpack.c.l.b16 %v1344
      %v1355 = vunpack.c.h.b16 %v1343
      %v1356 = vunpack.c.h.b16 %v1344
      %v1357 = vpack.c.b16 %v1350, %v1349
      %v1358 = vpack.c.b16 %v1352, %v1351
      %v1359 = vpack.c.b16 %v1354, %v1353
      %v1360 = vpack.c.b16 %v1356, %v1355
      %1365 = vst [vmem:[#allocation2 + $0x4] sm:$0xff] %v1357
      %1366 = vst [vmem:[#allocation2 + $0x14] sm:$0xff] %v1358
      %1367 = vst [vmem:[#allocation2 + $0x24] sm:$0xff] %v1359
      %1368 = vst [vmem:[#allocation2 + $0x34] sm:$0xff] %v1360
      %v1369 = vld [vmem:[#allocation2] sm:$0xff]
      %v1370 = vld [vmem:[#allocation2 + $0x8] sm:$0xff]
      %v1371 = vld [vmem:[#allocation2 + $0x10] sm:$0xff]
      %v1372 = vld [vmem:[#allocation2 + $0x18] sm:$0xff]
      %v1373 = vld [vmem:[#allocation2 + $0x20] sm:$0xff]
      %v1374 = vld [vmem:[#allocation2 + $0x28] sm:$0xff]
      %v1375 = vld [vmem:[#allocation2 + $0x30] sm:$0xff]
      %v1376 = vld [vmem:[#allocation2 + $0x38] sm:$0xff]
      %v1377 = vld [vmem:[%s2] sm:$0xf]
      %v1378 = vld [vmem:[%s2 + $0x4] sm:$0xf]
      %v1379 = vld [vmem:[%s2 + $0x8] sm:$0xf]
      %v1380 = vld [vmem:[%s2 + $0xc] sm:$0xf]
      %v1385 = vunpack.c.l.b16 %v1377
      %v1386 = vunpack.c.l.b16 %v1378
      %v1387 = vunpack.c.l.b16 %v1379
      %v1388 = vunpack.c.l.b16 %v1380
      %v1389 = vpack.c.b16 %v1386, %v1385
      %v1390 = vpack.c.b16 %v1388, %v1387
      %v1399 = vunpack.c.l.b16 %v1369
      %v1400 = vunpack.c.h.b16 %v1369
      %v1401 = vunpack.c.l.b16 %v1370
      %v1402 = vunpack.c.l.b16 %v1371
      %v1403 = vunpack.c.h.b16 %v1371
      %v1404 = vunpack.c.l.b16 %v1372
      %v1405 = vunpack.c.l.b16 %v1373
      %v1406 = vunpack.c.h.b16 %v1373
      %v1407 = vunpack.c.l.b16 %v1374
      %v1408 = vunpack.c.l.b16 %v1375
      %v1409 = vunpack.c.h.b16 %v1375
      %v1410 = vunpack.c.l.b16 %v1376
      %v1411 = vpack.c.b16 %v1402, %v1399
      %v1412 = vpack.c.b16 %v1403, %v1400
      %v1413 = vpack.c.b16 %v1404, %v1401
      %v1414 = vpack.c.b16 %v1408, %v1405
      %v1415 = vpack.c.b16 %v1409, %v1406
      %v1416 = vpack.c.b16 %v1410, %v1407
      %1417 = vrot.lane.b32.xlu0 %v1411, 17
      %v1418 = vpop.permute.xlu0 %1417
      %1419 = vrot.lane.b32.xlu0 %v1412, 17
      %v1420 = vpop.permute.xlu0 %1419
      %1421 = vrot.lane.b32.xlu0 %v1413, 17
      %v1422 = vpop.permute.xlu0 %1421
      %1423 = vrot.lane.b32.xlu0 %v1414, 17
      %v1424 = vpop.permute.xlu0 %1423
      %1425 = vrot.lane.b32.xlu0 %v1415, 17
      %v1426 = vpop.permute.xlu0 %1425
      %1427 = vrot.lane.b32.xlu0 %v1416, 17
      %v1428 = vpop.permute.xlu0 %1427
      %v1429 = vsel %vm295, %v1418, %v1420
      %v1430 = vsel %vm295, %v1420, %v1422
      %v1431 = vsel %vm295, %v1424, %v1426
      %v1432 = vsel %vm295, %v1426, %v1428
      %vm1437 = vcmask 261120
      %v1439 = vsel %vm1437, %v1389, 0
      %v1442 = vsel %vm1437, %v1390, 0
      %1444 = vmatprep.subr.bf16.mxu0 0
      %1445 = vmatpush1.bf16.msra.mxu0 0
      %1446 = vmatprep.subr.bf16.mxu0 0
      %1447 = vmatpush1.bf16.msra.mxu0 0
      %1448 = vmatprep.subr.bf16.mxu0 0
      %1449 = vmatpush1.bf16.msra.mxu0 0
      %1450 = vmatprep.subr.bf16.mxu0 0
      %1451 = vmatpush1.bf16.msra.mxu0 0
      %1452 = vmatprep.subr.bf16.mxu0 0
      %1453 = vmatpush1.bf16.msra.mxu0 0
      %1454 = vmatprep.subr.bf16.mxu0 0
      %1455 = vmatpush1.bf16.msra.mxu0 0
      %1456 = vmatprep.subr.bf16.mxu0 %v1432
      %1457 = vmatpush1.bf16.msra.mxu0 %v1431
      %1458 = vmatprep.subr.bf16.mxu0 %v1430
      %1459 = vmatpush1.bf16.msra.mxu0 %v1429
      %1460 = vmatprep.subr.bf16.mxu0 0
      %1461 = vmatpush2.bf16.msra.mxu0 0
      %1462 = vmatprep.subr.bf16.mxu0 0
      %1463 = vmatpush2.bf16.msra.mxu0 0
      %1464 = vmatprep.subr.bf16.mxu0 0
      %1465 = vmatpush2.bf16.msra.mxu0 0
      %1466 = vmatprep.subr.bf16.mxu0 0
      %1467 = vmatpush2.bf16.msra.mxu0 0
      %1468 = vmatprep.subr.bf16.mxu0 0
      %1469 = vmatpush2.bf16.msra.mxu0 0
      %1470 = vmatprep.subr.bf16.mxu0 0
      %1471 = vmatpush2.bf16.msra.mxu0 0
      %1472 = vmatprep.subr.bf16.mxu0 0
      %1473 = vmatpush2.bf16.msra.mxu0 0
      %1474 = vmatprep.subr.bf16.mxu0 0
      %1475 = vmatpush2.bf16.msra.mxu0 0
      %1476 = vmatprep.mubr.bf16.mxu0 0
      %1477 = vmatmul.mubr.bf16.gmra.mxu0 %v1439
      %v1478 = vpop.f32.mrf.mxu0
      %v1479 = vadd.f32 0.0, %v1478
      %v1480 = vpop.f32.mrf.mxu0
      %v1481 = vadd.f32 0.0, %v1480
      %v1482 = vpop.f32.mrf.mxu0
      %v1483 = vadd.f32 0.0, %v1482
      %v1484 = vpop.f32.mrf.mxu0
      %v1485 = vadd.f32 0.0, %v1484
      %1486 = vmatprep.mubr.bf16.mxu0 0
      %1487 = vmatmul.mubr.bf16.gmra.mxu0 %v1442
      %v1488 = vpop.f32.mrf.mxu0
      %v1489 = vadd.f32 0.0, %v1488
      %v1490 = vpop.f32.mrf.mxu0
      %v1491 = vadd.f32 0.0, %v1490
      %v1492 = vpop.f32.mrf.mxu0
      %v1493 = vadd.f32 0.0, %v1492
      %v1494 = vpop.f32.mrf.mxu0
      %v1495 = vadd.f32 0.0, %v1494
      %1496 = vdwg.mxu0
      %v1497 = vsel %vm367, %v1479, 0.0
      %v1498 = vsel %vm368, %v1481, 0.0
      %v1499 = vsel %vm367, %v1483, 0.0
      %v1500 = vsel %vm368, %v1485, 0.0
      %v1501 = vsel %vm367, %v1489, 0.0
      %v1502 = vsel %vm368, %v1491, 0.0
      %v1503 = vsel %vm367, %v1493, 0.0
      %v1504 = vsel %vm368, %v1495, 0.0
      %v1505 = vadd.f32 %v1497, 0.0
      %v1506 = vadd.f32 %v1498, 0.0
      %v1507 = vadd.f32 %v1499, 0.0
      %v1508 = vadd.f32 %v1500, 0.0
      %v1509 = vadd.f32 %v1501, 0.0
      %v1510 = vadd.f32 %v1502, 0.0
      %v1511 = vadd.f32 %v1503, 0.0
      %v1512 = vadd.f32 %v1504, 0.0
      %s1513 = scalar_lea.vmem %s2, 16
      %v1514 = vld [vmem:[%s1513] sm:$0xf]
      %v1515 = vld [vmem:[%s1513 + $0x4] sm:$0xf]
      %v1516 = vld [vmem:[%s1513 + $0x8] sm:$0xf]
      %v1517 = vld [vmem:[%s1513 + $0xc] sm:$0xf]
      %v1522 = vunpack.c.l.b16 %v1514
      %v1523 = vunpack.c.l.b16 %v1515
      %v1524 = vunpack.c.l.b16 %v1516
      %v1525 = vunpack.c.l.b16 %v1517
      %v1526 = vpack.c.b16 %v1523, %v1522
      %v1527 = vpack.c.b16 %v1525, %v1524
      %1528 = vrot.lane.b32.xlu0 %v1411, 16
      %v1529 = vpop.permute.xlu0 %1528
      %1530 = vrot.lane.b32.xlu0 %v1412, 16
      %v1531 = vpop.permute.xlu0 %1530
      %1532 = vrot.lane.b32.xlu0 %v1413, 16
      %v1533 = vpop.permute.xlu0 %1532
      %1534 = vrot.lane.b32.xlu0 %v1414, 16
      %v1535 = vpop.permute.xlu0 %1534
      %1536 = vrot.lane.b32.xlu0 %v1415, 16
      %v1537 = vpop.permute.xlu0 %1536
      %1538 = vrot.lane.b32.xlu0 %v1416, 16
      %v1539 = vpop.permute.xlu0 %1538
      %v1540 = vsel %vm406, %v1529, %v1531
      %v1541 = vsel %vm406, %v1531, %v1533
      %v1542 = vsel %vm406, %v1535, %v1537
      %v1543 = vsel %vm406, %v1537, %v1539
      %v1549 = vsel %vm1437, %v1526, 0
      %v1552 = vsel %vm1437, %v1527, 0
      %1554 = vmatprep.subr.bf16.mxu0 0
      %1555 = vmatpush1.bf16.msra.mxu0 0
      %1556 = vmatprep.subr.bf16.mxu0 0
      %1557 = vmatpush1.bf16.msra.mxu0 0
      %1558 = vmatprep.subr.bf16.mxu0 0
      %1559 = vmatpush1.bf16.msra.mxu0 0
      %1560 = vmatprep.subr.bf16.mxu0 0
      %1561 = vmatpush1.bf16.msra.mxu0 0
      %1562 = vmatprep.subr.bf16.mxu0 0
      %1563 = vmatpush1.bf16.msra.mxu0 0
      %1564 = vmatprep.subr.bf16.mxu0 0
      %1565 = vmatpush1.bf16.msra.mxu0 0
      %1566 = vmatprep.subr.bf16.mxu0 %v1543
      %1567 = vmatpush1.bf16.msra.mxu0 %v1542
      %1568 = vmatprep.subr.bf16.mxu0 %v1541
      %1569 = vmatpush1.bf16.msra.mxu0 %v1540
      %1570 = vmatprep.subr.bf16.mxu0 0
      %1571 = vmatpush2.bf16.msra.mxu0 0
      %1572 = vmatprep.subr.bf16.mxu0 0
      %1573 = vmatpush2.bf16.msra.mxu0 0
      %1574 = vmatprep.subr.bf16.mxu0 0
      %1575 = vmatpush2.bf16.msra.mxu0 0
      %1576 = vmatprep.subr.bf16.mxu0 0
      %1577 = vmatpush2.bf16.msra.mxu0 0
      %1578 = vmatprep.subr.bf16.mxu0 0
      %1579 = vmatpush2.bf16.msra.mxu0 0
      %1580 = vmatprep.subr.bf16.mxu0 0
      %1581 = vmatpush2.bf16.msra.mxu0 0
      %1582 = vmatprep.subr.bf16.mxu0 0
      %1583 = vmatpush2.bf16.msra.mxu0 0
      %1584 = vmatprep.subr.bf16.mxu0 0
      %1585 = vmatpush2.bf16.msra.mxu0 0
      %1586 = vmatprep.mubr.bf16.mxu0 0
      %1587 = vmatmul.mubr.bf16.gmra.mxu0 %v1549
      %v1588 = vpop.f32.mrf.mxu0
      %v1589 = vadd.f32 0.0, %v1588
      %v1590 = vpop.f32.mrf.mxu0
      %v1591 = vadd.f32 0.0, %v1590
      %v1592 = vpop.f32.mrf.mxu0
      %v1593 = vadd.f32 0.0, %v1592
      %v1594 = vpop.f32.mrf.mxu0
      %v1595 = vadd.f32 0.0, %v1594
      %1596 = vmatprep.mubr.bf16.mxu0 0
      %1597 = vmatmul.mubr.bf16.gmra.mxu0 %v1552
      %v1598 = vpop.f32.mrf.mxu0
      %v1599 = vadd.f32 0.0, %v1598
      %v1600 = vpop.f32.mrf.mxu0
      %v1601 = vadd.f32 0.0, %v1600
      %v1602 = vpop.f32.mrf.mxu0
      %v1603 = vadd.f32 0.0, %v1602
      %v1604 = vpop.f32.mrf.mxu0
      %v1605 = vadd.f32 0.0, %v1604
      %1606 = vdwg.mxu0
      %v1607 = vadd.f32 %v1505, %v1589
      %v1608 = vadd.f32 %v1506, %v1591
      %v1609 = vadd.f32 %v1507, %v1593
      %v1610 = vadd.f32 %v1508, %v1595
      %v1611 = vadd.f32 %v1509, %v1599
      %v1612 = vadd.f32 %v1510, %v1601
      %v1613 = vadd.f32 %v1511, %v1603
      %v1614 = vadd.f32 %v1512, %v1605
      %s1615 = scalar_lea.vmem %s2, 32
      %v1616 = vld [vmem:[%s1615] sm:$0xf]
      %v1617 = vld [vmem:[%s1615 + $0x4] sm:$0xf]
      %v1618 = vld [vmem:[%s1615 + $0x8] sm:$0xf]
      %v1619 = vld [vmem:[%s1615 + $0xc] sm:$0xf]
      %v1624 = vunpack.c.l.b16 %v1616
      %v1625 = vunpack.c.l.b16 %v1617
      %v1626 = vunpack.c.l.b16 %v1618
      %v1627 = vunpack.c.l.b16 %v1619
      %v1628 = vpack.c.b16 %v1625, %v1624
      %v1629 = vpack.c.b16 %v1627, %v1626
      %1630 = vrot.lane.b32.xlu0 %v1411, 15
      %v1631 = vpop.permute.xlu0 %1630
      %1632 = vrot.lane.b32.xlu0 %v1412, 15
      %v1633 = vpop.permute.xlu0 %1632
      %1634 = vrot.lane.b32.xlu0 %v1413, 15
      %v1635 = vpop.permute.xlu0 %1634
      %1636 = vrot.lane.b32.xlu0 %v1414, 15
      %v1637 = vpop.permute.xlu0 %1636
      %1638 = vrot.lane.b32.xlu0 %v1415, 15
      %v1639 = vpop.permute.xlu0 %1638
      %1640 = vrot.lane.b32.xlu0 %v1416, 15
      %v1641 = vpop.permute.xlu0 %1640
      %v1642 = vsel %vm503, %v1631, %v1633
      %v1643 = vsel %vm503, %v1633, %v1635
      %v1644 = vsel %vm503, %v1637, %v1639
      %v1645 = vsel %vm503, %v1639, %v1641
      %v1651 = vsel %vm1437, %v1628, 0
      %v1654 = vsel %vm1437, %v1629, 0
      %1656 = vmatprep.subr.bf16.mxu0 0
      %1657 = vmatpush1.bf16.msra.mxu0 0
      %1658 = vmatprep.subr.bf16.mxu0 0
      %1659 = vmatpush1.bf16.msra.mxu0 0
      %1660 = vmatprep.subr.bf16.mxu0 0
      %1661 = vmatpush1.bf16.msra.mxu0 0
      %1662 = vmatprep.subr.bf16.mxu0 0
      %1663 = vmatpush1.bf16.msra.mxu0 0
      %1664 = vmatprep.subr.bf16.mxu0 0
      %1665 = vmatpush1.bf16.msra.mxu0 0
      %1666 = vmatprep.subr.bf16.mxu0 0
      %1667 = vmatpush1.bf16.msra.mxu0 0
      %1668 = vmatprep.subr.bf16.mxu0 %v1645
      %1669 = vmatpush1.bf16.msra.mxu0 %v1644
      %1670 = vmatprep.subr.bf16.mxu0 %v1643
      %1671 = vmatpush1.bf16.msra.mxu0 %v1642
      %1672 = vmatprep.subr.bf16.mxu0 0
      %1673 = vmatpush2.bf16.msra.mxu0 0
      %1674 = vmatprep.subr.bf16.mxu0 0
      %1675 = vmatpush2.bf16.msra.mxu0 0
      %1676 = vmatprep.subr.bf16.mxu0 0
      %1677 = vmatpush2.bf16.msra.mxu0 0
      %1678 = vmatprep.subr.bf16.mxu0 0
      %1679 = vmatpush2.bf16.msra.mxu0 0
      %1680 = vmatprep.subr.bf16.mxu0 0
      %1681 = vmatpush2.bf16.msra.mxu0 0
      %1682 = vmatprep.subr.bf16.mxu0 0
      %1683 = vmatpush2.bf16.msra.mxu0 0
      %1684 = vmatprep.subr.bf16.mxu0 0
      %1685 = vmatpush2.bf16.msra.mxu0 0
      %1686 = vmatprep.subr.bf16.mxu0 0
      %1687 = vmatpush2.bf16.msra.mxu0 0
      %1688 = vmatprep.mubr.bf16.mxu0 0
      %1689 = vmatmul.mubr.bf16.gmra.mxu0 %v1651
      %v1690 = vpop.f32.mrf.mxu0
      %v1691 = vadd.f32 0.0, %v1690
      %v1692 = vpop.f32.mrf.mxu0
      %v1693 = vadd.f32 0.0, %v1692
      %v1694 = vpop.f32.mrf.mxu0
      %v1695 = vadd.f32 0.0, %v1694
      %v1696 = vpop.f32.mrf.mxu0
      %v1697 = vadd.f32 0.0, %v1696
      %1698 = vmatprep.mubr.bf16.mxu0 0
      %1699 = vmatmul.mubr.bf16.gmra.mxu0 %v1654
      %v1700 = vpop.f32.mrf.mxu0
      %v1701 = vadd.f32 0.0, %v1700
      %v1702 = vpop.f32.mrf.mxu0
      %v1703 = vadd.f32 0.0, %v1702
      %v1704 = vpop.f32.mrf.mxu0
      %v1705 = vadd.f32 0.0, %v1704
      %v1706 = vpop.f32.mrf.mxu0
      %v1707 = vadd.f32 0.0, %v1706
      %1708 = vdwg.mxu0
      %v1709 = vsel %vm573, %v1691, 0.0
      %v1710 = vsel %vm574, %v1693, 0.0
      %v1711 = vsel %vm573, %v1695, 0.0
      %v1712 = vsel %vm574, %v1697, 0.0
      %v1713 = vsel %vm573, %v1701, 0.0
      %v1714 = vsel %vm574, %v1703, 0.0
      %v1715 = vsel %vm573, %v1705, 0.0
      %v1716 = vsel %vm574, %v1707, 0.0
      %v1717 = vadd.f32 %v1607, %v1709
      %v1718 = vadd.f32 %v1608, %v1710
      %v1719 = vadd.f32 %v1609, %v1711
      %v1720 = vadd.f32 %v1610, %v1712
      %v1721 = vadd.f32 %v1611, %v1713
      %v1722 = vadd.f32 %v1612, %v1714
      %v1723 = vadd.f32 %v1613, %v1715
      %v1724 = vadd.f32 %v1614, %v1716
      %s1725 = scalar_lea.vmem %s2, 48
      %v1726 = vld [vmem:[%s1725] sm:$0xf]
      %v1727 = vld [vmem:[%s1725 + $0x4] sm:$0xf]
      %v1728 = vld [vmem:[%s1725 + $0x8] sm:$0xf]
      %v1729 = vld [vmem:[%s1725 + $0xc] sm:$0xf]
      %v1734 = vunpack.c.l.b16 %v1726
      %v1735 = vunpack.c.l.b16 %v1727
      %v1736 = vunpack.c.l.b16 %v1728
      %v1737 = vunpack.c.l.b16 %v1729
      %v1738 = vpack.c.b16 %v1735, %v1734
      %v1739 = vpack.c.b16 %v1737, %v1736
      %1740 = vrot.lane.b32.xlu0 %v1411, 1
      %v1741 = vpop.permute.xlu0 %1740
      %1742 = vrot.lane.b32.xlu0 %v1412, 1
      %v1743 = vpop.permute.xlu0 %1742
      %1744 = vrot.lane.b32.xlu0 %v1413, 1
      %v1745 = vpop.permute.xlu0 %1744
      %1746 = vrot.lane.b32.xlu0 %v1414, 1
      %v1747 = vpop.permute.xlu0 %1746
      %1748 = vrot.lane.b32.xlu0 %v1415, 1
      %v1749 = vpop.permute.xlu0 %1748
      %1750 = vrot.lane.b32.xlu0 %v1416, 1
      %v1751 = vpop.permute.xlu0 %1750
      %v1752 = vsel %vm612, %v1741, %v1743
      %v1753 = vsel %vm612, %v1743, %v1745
      %v1754 = vsel %vm612, %v1747, %v1749
      %v1755 = vsel %vm612, %v1749, %v1751
      %v1761 = vsel %vm1437, %v1738, 0
      %v1764 = vsel %vm1437, %v1739, 0
      %1766 = vmatprep.subr.bf16.mxu0 0
      %1767 = vmatpush1.bf16.msra.mxu0 0
      %1768 = vmatprep.subr.bf16.mxu0 0
      %1769 = vmatpush1.bf16.msra.mxu0 0
      %1770 = vmatprep.subr.bf16.mxu0 0
      %1771 = vmatpush1.bf16.msra.mxu0 0
      %1772 = vmatprep.subr.bf16.mxu0 0
      %1773 = vmatpush1.bf16.msra.mxu0 0
      %1774 = vmatprep.subr.bf16.mxu0 0
      %1775 = vmatpush1.bf16.msra.mxu0 0
      %1776 = vmatprep.subr.bf16.mxu0 0
      %1777 = vmatpush1.bf16.msra.mxu0 0
      %1778 = vmatprep.subr.bf16.mxu0 %v1755
      %1779 = vmatpush1.bf16.msra.mxu0 %v1754
      %1780 = vmatprep.subr.bf16.mxu0 %v1753
      %1781 = vmatpush1.bf16.msra.mxu0 %v1752
      %1782 = vmatprep.subr.bf16.mxu0 0
      %1783 = vmatpush2.bf16.msra.mxu0 0
      %1784 = vmatprep.subr.bf16.mxu0 0
      %1785 = vmatpush2.bf16.msra.mxu0 0
      %1786 = vmatprep.subr.bf16.mxu0 0
      %1787 = vmatpush2.bf16.msra.mxu0 0
      %1788 = vmatprep.subr.bf16.mxu0 0
      %1789 = vmatpush2.bf16.msra.mxu0 0
      %1790 = vmatprep.subr.bf16.mxu0 0
      %1791 = vmatpush2.bf16.msra.mxu0 0
      %1792 = vmatprep.subr.bf16.mxu0 0
      %1793 = vmatpush2.bf16.msra.mxu0 0
      %1794 = vmatprep.subr.bf16.mxu0 0
      %1795 = vmatpush2.bf16.msra.mxu0 0
      %1796 = vmatprep.subr.bf16.mxu0 0
      %1797 = vmatpush2.bf16.msra.mxu0 0
      %1798 = vmatprep.mubr.bf16.mxu0 0
      %1799 = vmatmul.mubr.bf16.gmra.mxu0 %v1761
      %v1800 = vpop.f32.mrf.mxu0
      %v1801 = vadd.f32 0.0, %v1800
      %v1802 = vpop.f32.mrf.mxu0
      %v1803 = vadd.f32 0.0, %v1802
      %v1804 = vpop.f32.mrf.mxu0
      %v1805 = vadd.f32 0.0, %v1804
      %v1806 = vpop.f32.mrf.mxu0
      %v1807 = vadd.f32 0.0, %v1806
      %1808 = vmatprep.mubr.bf16.mxu0 0
      %1809 = vmatmul.mubr.bf16.gmra.mxu0 %v1764
      %v1810 = vpop.f32.mrf.mxu0
      %v1811 = vadd.f32 0.0, %v1810
      %v1812 = vpop.f32.mrf.mxu0
      %v1813 = vadd.f32 0.0, %v1812
      %v1814 = vpop.f32.mrf.mxu0
      %v1815 = vadd.f32 0.0, %v1814
      %v1816 = vpop.f32.mrf.mxu0
      %v1817 = vadd.f32 0.0, %v1816
      %1818 = vdwg.mxu0
      %v1819 = vsel %vm367, %v1801, 0.0
      %v1820 = vsel %vm368, %v1803, 0.0
      %v1821 = vsel %vm367, %v1805, 0.0
      %v1822 = vsel %vm368, %v1807, 0.0
      %v1823 = vsel %vm367, %v1811, 0.0
      %v1824 = vsel %vm368, %v1813, 0.0
      %v1825 = vsel %vm367, %v1815, 0.0
      %v1826 = vsel %vm368, %v1817, 0.0
      %v1827 = vadd.f32 %v1717, %v1819
      %v1828 = vadd.f32 %v1718, %v1820
      %v1829 = vadd.f32 %v1719, %v1821
      %v1830 = vadd.f32 %v1720, %v1822
      %v1831 = vadd.f32 %v1721, %v1823
      %v1832 = vadd.f32 %v1722, %v1824
      %v1833 = vadd.f32 %v1723, %v1825
      %v1834 = vadd.f32 %v1724, %v1826
      %s1835 = scalar_lea.vmem %s2, 64
      %v1836 = vld [vmem:[%s1835] sm:$0xf]
      %v1837 = vld [vmem:[%s1835 + $0x4] sm:$0xf]
      %v1838 = vld [vmem:[%s1835 + $0x8] sm:$0xf]
      %v1839 = vld [vmem:[%s1835 + $0xc] sm:$0xf]
      %v1844 = vunpack.c.l.b16 %v1836
      %v1845 = vunpack.c.l.b16 %v1837
      %v1846 = vunpack.c.l.b16 %v1838
      %v1847 = vunpack.c.l.b16 %v1839
      %v1848 = vpack.c.b16 %v1845, %v1844
      %v1849 = vpack.c.b16 %v1847, %v1846
      %v1855 = vsel %vm1437, %v1848, 0
      %v1858 = vsel %vm1437, %v1849, 0
      %1860 = vmatprep.subr.bf16.mxu0 0
      %1861 = vmatpush1.bf16.msra.mxu0 0
      %1862 = vmatprep.subr.bf16.mxu0 0
      %1863 = vmatpush1.bf16.msra.mxu0 0
      %1864 = vmatprep.subr.bf16.mxu0 0
      %1865 = vmatpush1.bf16.msra.mxu0 0
      %1866 = vmatprep.subr.bf16.mxu0 0
      %1867 = vmatpush1.bf16.msra.mxu0 0
      %1868 = vmatprep.subr.bf16.mxu0 0
      %1869 = vmatpush1.bf16.msra.mxu0 0
      %1870 = vmatprep.subr.bf16.mxu0 0
      %1871 = vmatpush1.bf16.msra.mxu0 0
      %1872 = vmatprep.subr.bf16.mxu0 %v1416
      %1873 = vmatpush1.bf16.msra.mxu0 %v1415
      %1874 = vmatprep.subr.bf16.mxu0 %v1413
      %1875 = vmatpush1.bf16.msra.mxu0 %v1412
      %1876 = vmatprep.subr.bf16.mxu0 0
      %1877 = vmatpush2.bf16.msra.mxu0 0
      %1878 = vmatprep.subr.bf16.mxu0 0
      %1879 = vmatpush2.bf16.msra.mxu0 0
      %1880 = vmatprep.subr.bf16.mxu0 0
      %1881 = vmatpush2.bf16.msra.mxu0 0
      %1882 = vmatprep.subr.bf16.mxu0 0
      %1883 = vmatpush2.bf16.msra.mxu0 0
      %1884 = vmatprep.subr.bf16.mxu0 0
      %1885 = vmatpush2.bf16.msra.mxu0 0
      %1886 = vmatprep.subr.bf16.mxu0 0
      %1887 = vmatpush2.bf16.msra.mxu0 0
      %1888 = vmatprep.subr.bf16.mxu0 0
      %1889 = vmatpush2.bf16.msra.mxu0 0
      %1890 = vmatprep.subr.bf16.mxu0 0
      %1891 = vmatpush2.bf16.msra.mxu0 0
      %1892 = vmatprep.mubr.bf16.mxu0 0
      %1893 = vmatmul.mubr.bf16.gmra.mxu0 %v1855
      %v1894 = vpop.f32.mrf.mxu0
      %v1895 = vadd.f32 0.0, %v1894
      %v1896 = vpop.f32.mrf.mxu0
      %v1897 = vadd.f32 0.0, %v1896
      %v1898 = vpop.f32.mrf.mxu0
      %v1899 = vadd.f32 0.0, %v1898
      %v1900 = vpop.f32.mrf.mxu0
      %v1901 = vadd.f32 0.0, %v1900
      %1902 = vmatprep.mubr.bf16.mxu0 0
      %1903 = vmatmul.mubr.bf16.gmra.mxu0 %v1858
      %v1904 = vpop.f32.mrf.mxu0
      %v1905 = vadd.f32 0.0, %v1904
      %v1906 = vpop.f32.mrf.mxu0
      %v1907 = vadd.f32 0.0, %v1906
      %v1908 = vpop.f32.mrf.mxu0
      %v1909 = vadd.f32 0.0, %v1908
      %v1910 = vpop.f32.mrf.mxu0
      %v1911 = vadd.f32 0.0, %v1910
      %1912 = vdwg.mxu0
      %v1913 = vadd.f32 %v1827, %v1895
      %v1914 = vadd.f32 %v1828, %v1897
      %v1915 = vadd.f32 %v1829, %v1899
      %v1916 = vadd.f32 %v1830, %v1901
      %v1917 = vadd.f32 %v1831, %v1905
      %v1918 = vadd.f32 %v1832, %v1907
      %v1919 = vadd.f32 %v1833, %v1909
      %v1920 = vadd.f32 %v1834, %v1911
      %s1921 = scalar_lea.vmem %s2, 80
      %v1922 = vld [vmem:[%s1921] sm:$0xf]
      %v1923 = vld [vmem:[%s1921 + $0x4] sm:$0xf]
      %v1924 = vld [vmem:[%s1921 + $0x8] sm:$0xf]
      %v1925 = vld [vmem:[%s1921 + $0xc] sm:$0xf]
      %v1930 = vunpack.c.l.b16 %v1922
      %v1931 = vunpack.c.l.b16 %v1923
      %v1932 = vunpack.c.l.b16 %v1924
      %v1933 = vunpack.c.l.b16 %v1925
      %v1934 = vpack.c.b16 %v1931, %v1930
      %v1935 = vpack.c.b16 %v1933, %v1932
      %v1936 = vunpack.c.h.b16 %v1370
      %v1937 = vunpack.c.h.b16 %v1372
      %v1938 = vunpack.c.h.b16 %v1374
      %v1939 = vunpack.c.h.b16 %v1376
      %v1940 = vpack.c.b16 %v1937, %v1936
      %v1941 = vpack.c.b16 %v1939, %v1938
      %1942 = vrot.lane.b32.xlu0 %v1412, 127
      %v1943 = vpop.permute.xlu0 %1942
      %1944 = vrot.lane.b32.xlu0 %v1413, 127
      %v1945 = vpop.permute.xlu0 %1944
      %1946 = vrot.lane.b32.xlu0 %v1940, 127
      %v1947 = vpop.permute.xlu0 %1946
      %1948 = vrot.lane.b32.xlu0 %v1415, 127
      %v1949 = vpop.permute.xlu0 %1948
      %1950 = vrot.lane.b32.xlu0 %v1416, 127
      %v1951 = vpop.permute.xlu0 %1950
      %1952 = vrot.lane.b32.xlu0 %v1941, 127
      %v1953 = vpop.permute.xlu0 %1952
      %v1954 = vsel %vm806, %v1943, %v1945
      %v1955 = vsel %vm806, %v1945, %v1947
      %v1956 = vsel %vm806, %v1949, %v1951
      %v1957 = vsel %vm806, %v1951, %v1953
      %v1963 = vsel %vm1437, %v1934, 0
      %v1966 = vsel %vm1437, %v1935, 0
      %1968 = vmatprep.subr.bf16.mxu0 0
      %1969 = vmatpush1.bf16.msra.mxu0 0
      %1970 = vmatprep.subr.bf16.mxu0 0
      %1971 = vmatpush1.bf16.msra.mxu0 0
      %1972 = vmatprep.subr.bf16.mxu0 0
      %1973 = vmatpush1.bf16.msra.mxu0 0
      %1974 = vmatprep.subr.bf16.mxu0 0
      %1975 = vmatpush1.bf16.msra.mxu0 0
      %1976 = vmatprep.subr.bf16.mxu0 0
      %1977 = vmatpush1.bf16.msra.mxu0 0
      %1978 = vmatprep.subr.bf16.mxu0 0
      %1979 = vmatpush1.bf16.msra.mxu0 0
      %1980 = vmatprep.subr.bf16.mxu0 %v1957
      %1981 = vmatpush1.bf16.msra.mxu0 %v1956
      %1982 = vmatprep.subr.bf16.mxu0 %v1955
      %1983 = vmatpush1.bf16.msra.mxu0 %v1954
      %1984 = vmatprep.subr.bf16.mxu0 0
      %1985 = vmatpush2.bf16.msra.mxu0 0
      %1986 = vmatprep.subr.bf16.mxu0 0
      %1987 = vmatpush2.bf16.msra.mxu0 0
      %1988 = vmatprep.subr.bf16.mxu0 0
      %1989 = vmatpush2.bf16.msra.mxu0 0
      %1990 = vmatprep.subr.bf16.mxu0 0
      %1991 = vmatpush2.bf16.msra.mxu0 0
      %1992 = vmatprep.subr.bf16.mxu0 0
      %1993 = vmatpush2.bf16.msra.mxu0 0
      %1994 = vmatprep.subr.bf16.mxu0 0
      %1995 = vmatpush2.bf16.msra.mxu0 0
      %1996 = vmatprep.subr.bf16.mxu0 0
      %1997 = vmatpush2.bf16.msra.mxu0 0
      %1998 = vmatprep.subr.bf16.mxu0 0
      %1999 = vmatpush2.bf16.msra.mxu0 0
      %2000 = vmatprep.mubr.bf16.mxu0 0
      %2001 = vmatmul.mubr.bf16.gmra.mxu0 %v1963
      %v2002 = vpop.f32.mrf.mxu0
      %v2003 = vadd.f32 0.0, %v2002
      %v2004 = vpop.f32.mrf.mxu0
      %v2005 = vadd.f32 0.0, %v2004
      %v2006 = vpop.f32.mrf.mxu0
      %v2007 = vadd.f32 0.0, %v2006
      %v2008 = vpop.f32.mrf.mxu0
      %v2009 = vadd.f32 0.0, %v2008
      %2010 = vmatprep.mubr.bf16.mxu0 0
      %2011 = vmatmul.mubr.bf16.gmra.mxu0 %v1966
      %v2012 = vpop.f32.mrf.mxu0
      %v2013 = vadd.f32 0.0, %v2012
      %v2014 = vpop.f32.mrf.mxu0
      %v2015 = vadd.f32 0.0, %v2014
      %v2016 = vpop.f32.mrf.mxu0
      %v2017 = vadd.f32 0.0, %v2016
      %v2018 = vpop.f32.mrf.mxu0
      %v2019 = vadd.f32 0.0, %v2018
      %2020 = vdwg.mxu0
      %v2021 = vsel %vm573, %v2003, 0.0
      %v2022 = vsel %vm574, %v2005, 0.0
      %v2023 = vsel %vm573, %v2007, 0.0
      %v2024 = vsel %vm574, %v2009, 0.0
      %v2025 = vsel %vm573, %v2013, 0.0
      %v2026 = vsel %vm574, %v2015, 0.0
      %v2027 = vsel %vm573, %v2017, 0.0
      %v2028 = vsel %vm574, %v2019, 0.0
      %v2029 = vadd.f32 %v1913, %v2021
      %v2030 = vadd.f32 %v1914, %v2022
      %v2031 = vadd.f32 %v1915, %v2023
      %v2032 = vadd.f32 %v1916, %v2024
      %v2033 = vadd.f32 %v1917, %v2025
      %v2034 = vadd.f32 %v1918, %v2026
      %v2035 = vadd.f32 %v1919, %v2027
      %v2036 = vadd.f32 %v1920, %v2028
      %s2037 = scalar_lea.vmem %s2, 96
      %v2038 = vld [vmem:[%s2037] sm:$0xf]
      %v2039 = vld [vmem:[%s2037 + $0x4] sm:$0xf]
      %v2040 = vld [vmem:[%s2037 + $0x8] sm:$0xf]
      %v2041 = vld [vmem:[%s2037 + $0xc] sm:$0xf]
      %v2046 = vunpack.c.l.b16 %v2038
      %v2047 = vunpack.c.l.b16 %v2039
      %v2048 = vunpack.c.l.b16 %v2040
      %v2049 = vunpack.c.l.b16 %v2041
      %v2050 = vpack.c.b16 %v2047, %v2046
      %v2051 = vpack.c.b16 %v2049, %v2048
      %2052 = vrot.lane.b32.xlu0 %v1412, 113
      %v2053 = vpop.permute.xlu0 %2052
      %2054 = vrot.lane.b32.xlu0 %v1413, 113
      %v2055 = vpop.permute.xlu0 %2054
      %2056 = vrot.lane.b32.xlu0 %v1940, 113
      %v2057 = vpop.permute.xlu0 %2056
      %2058 = vrot.lane.b32.xlu0 %v1415, 113
      %v2059 = vpop.permute.xlu0 %2058
      %2060 = vrot.lane.b32.xlu0 %v1416, 113
      %v2061 = vpop.permute.xlu0 %2060
      %2062 = vrot.lane.b32.xlu0 %v1941, 113
      %v2063 = vpop.permute.xlu0 %2062
      %v2064 = vsel %vm911, %v2053, %v2055
      %v2065 = vsel %vm911, %v2055, %v2057
      %v2066 = vsel %vm911, %v2059, %v2061
      %v2067 = vsel %vm911, %v2061, %v2063
      %v2073 = vsel %vm1437, %v2050, 0
      %v2076 = vsel %vm1437, %v2051, 0
      %2078 = vmatprep.subr.bf16.mxu0 0
      %2079 = vmatpush1.bf16.msra.mxu0 0
      %2080 = vmatprep.subr.bf16.mxu0 0
      %2081 = vmatpush1.bf16.msra.mxu0 0
      %2082 = vmatprep.subr.bf16.mxu0 0
      %2083 = vmatpush1.bf16.msra.mxu0 0
      %2084 = vmatprep.subr.bf16.mxu0 0
      %2085 = vmatpush1.bf16.msra.mxu0 0
      %2086 = vmatprep.subr.bf16.mxu0 0
      %2087 = vmatpush1.bf16.msra.mxu0 0
      %2088 = vmatprep.subr.bf16.mxu0 0
      %2089 = vmatpush1.bf16.msra.mxu0 0
      %2090 = vmatprep.subr.bf16.mxu0 %v2067
      %2091 = vmatpush1.bf16.msra.mxu0 %v2066
      %2092 = vmatprep.subr.bf16.mxu0 %v2065
      %2093 = vmatpush1.bf16.msra.mxu0 %v2064
      %2094 = vmatprep.subr.bf16.mxu0 0
      %2095 = vmatpush2.bf16.msra.mxu0 0
      %2096 = vmatprep.subr.bf16.mxu0 0
      %2097 = vmatpush2.bf16.msra.mxu0 0
      %2098 = vmatprep.subr.bf16.mxu0 0
      %2099 = vmatpush2.bf16.msra.mxu0 0
      %2100 = vmatprep.subr.bf16.mxu0 0
      %2101 = vmatpush2.bf16.msra.mxu0 0
      %2102 = vmatprep.subr.bf16.mxu0 0
      %2103 = vmatpush2.bf16.msra.mxu0 0
      %2104 = vmatprep.subr.bf16.mxu0 0
      %2105 = vmatpush2.bf16.msra.mxu0 0
      %2106 = vmatprep.subr.bf16.mxu0 0
      %2107 = vmatpush2.bf16.msra.mxu0 0
      %2108 = vmatprep.subr.bf16.mxu0 0
      %2109 = vmatpush2.bf16.msra.mxu0 0
      %2110 = vmatprep.mubr.bf16.mxu0 0
      %2111 = vmatmul.mubr.bf16.gmra.mxu0 %v2073
      %v2112 = vpop.f32.mrf.mxu0
      %v2113 = vadd.f32 0.0, %v2112
      %v2114 = vpop.f32.mrf.mxu0
      %v2115 = vadd.f32 0.0, %v2114
      %v2116 = vpop.f32.mrf.mxu0
      %v2117 = vadd.f32 0.0, %v2116
      %v2118 = vpop.f32.mrf.mxu0
      %v2119 = vadd.f32 0.0, %v2118
      %2120 = vmatprep.mubr.bf16.mxu0 0
      %2121 = vmatmul.mubr.bf16.gmra.mxu0 %v2076
      %v2122 = vpop.f32.mrf.mxu0
      %v2123 = vadd.f32 0.0, %v2122
      %v2124 = vpop.f32.mrf.mxu0
      %v2125 = vadd.f32 0.0, %v2124
      %v2126 = vpop.f32.mrf.mxu0
      %v2127 = vadd.f32 0.0, %v2126
      %v2128 = vpop.f32.mrf.mxu0
      %v2129 = vadd.f32 0.0, %v2128
      %2130 = vdwg.mxu0
      %v2131 = vsel %vm367, %v2113, 0.0
      %v2132 = vsel %vm368, %v2115, 0.0
      %v2133 = vsel %vm367, %v2117, 0.0
      %v2134 = vsel %vm368, %v2119, 0.0
      %v2135 = vsel %vm367, %v2123, 0.0
      %v2136 = vsel %vm368, %v2125, 0.0
      %v2137 = vsel %vm367, %v2127, 0.0
      %v2138 = vsel %vm368, %v2129, 0.0
      %v2139 = vadd.f32 %v2029, %v2131
      %v2140 = vadd.f32 %v2030, %v2132
      %v2141 = vadd.f32 %v2031, %v2133
      %v2142 = vadd.f32 %v2032, %v2134
      %v2143 = vadd.f32 %v2033, %v2135
      %v2144 = vadd.f32 %v2034, %v2136
      %v2145 = vadd.f32 %v2035, %v2137
      %v2146 = vadd.f32 %v2036, %v2138
      %s2147 = scalar_lea.vmem %s2, 112
      %v2148 = vld [vmem:[%s2147] sm:$0xf]
      %v2149 = vld [vmem:[%s2147 + $0x4] sm:$0xf]
      %v2150 = vld [vmem:[%s2147 + $0x8] sm:$0xf]
      %v2151 = vld [vmem:[%s2147 + $0xc] sm:$0xf]
      %v2156 = vunpack.c.l.b16 %v2148
      %v2157 = vunpack.c.l.b16 %v2149
      %v2158 = vunpack.c.l.b16 %v2150
      %v2159 = vunpack.c.l.b16 %v2151
      %v2160 = vpack.c.b16 %v2157, %v2156
      %v2161 = vpack.c.b16 %v2159, %v2158
      %2162 = vrot.lane.b32.xlu0 %v1412, 112
      %v2163 = vpop.permute.xlu0 %2162
      %2164 = vrot.lane.b32.xlu0 %v1413, 112
      %v2165 = vpop.permute.xlu0 %2164
      %2166 = vrot.lane.b32.xlu0 %v1940, 112
      %v2167 = vpop.permute.xlu0 %2166
      %2168 = vrot.lane.b32.xlu0 %v1415, 112
      %v2169 = vpop.permute.xlu0 %2168
      %2170 = vrot.lane.b32.xlu0 %v1416, 112
      %v2171 = vpop.permute.xlu0 %2170
      %2172 = vrot.lane.b32.xlu0 %v1941, 112
      %v2173 = vpop.permute.xlu0 %2172
      %v2174 = vsel %vm1016, %v2163, %v2165
      %v2175 = vsel %vm1016, %v2165, %v2167
      %v2176 = vsel %vm1016, %v2169, %v2171
      %v2177 = vsel %vm1016, %v2171, %v2173
      %v2183 = vsel %vm1437, %v2160, 0
      %v2186 = vsel %vm1437, %v2161, 0
      %2188 = vmatprep.subr.bf16.mxu0 0
      %2189 = vmatpush1.bf16.msra.mxu0 0
      %2190 = vmatprep.subr.bf16.mxu0 0
      %2191 = vmatpush1.bf16.msra.mxu0 0
      %2192 = vmatprep.subr.bf16.mxu0 0
      %2193 = vmatpush1.bf16.msra.mxu0 0
      %2194 = vmatprep.subr.bf16.mxu0 0
      %2195 = vmatpush1.bf16.msra.mxu0 0
      %2196 = vmatprep.subr.bf16.mxu0 0
      %2197 = vmatpush1.bf16.msra.mxu0 0
      %2198 = vmatprep.subr.bf16.mxu0 0
      %2199 = vmatpush1.bf16.msra.mxu0 0
      %2200 = vmatprep.subr.bf16.mxu0 %v2177
      %2201 = vmatpush1.bf16.msra.mxu0 %v2176
      %2202 = vmatprep.subr.bf16.mxu0 %v2175
      %2203 = vmatpush1.bf16.msra.mxu0 %v2174
      %2204 = vmatprep.subr.bf16.mxu0 0
      %2205 = vmatpush2.bf16.msra.mxu0 0
      %2206 = vmatprep.subr.bf16.mxu0 0
      %2207 = vmatpush2.bf16.msra.mxu0 0
      %2208 = vmatprep.subr.bf16.mxu0 0
      %2209 = vmatpush2.bf16.msra.mxu0 0
      %2210 = vmatprep.subr.bf16.mxu0 0
      %2211 = vmatpush2.bf16.msra.mxu0 0
      %2212 = vmatprep.subr.bf16.mxu0 0
      %2213 = vmatpush2.bf16.msra.mxu0 0
      %2214 = vmatprep.subr.bf16.mxu0 0
      %2215 = vmatpush2.bf16.msra.mxu0 0
      %2216 = vmatprep.subr.bf16.mxu0 0
      %2217 = vmatpush2.bf16.msra.mxu0 0
      %2218 = vmatprep.subr.bf16.mxu0 0
      %2219 = vmatpush2.bf16.msra.mxu0 0
      %2220 = vmatprep.mubr.bf16.mxu0 0
      %2221 = vmatmul.mubr.bf16.gmra.mxu0 %v2183
      %v2222 = vpop.f32.mrf.mxu0
      %v2223 = vadd.f32 0.0, %v2222
      %v2224 = vpop.f32.mrf.mxu0
      %v2225 = vadd.f32 0.0, %v2224
      %v2226 = vpop.f32.mrf.mxu0
      %v2227 = vadd.f32 0.0, %v2226
      %v2228 = vpop.f32.mrf.mxu0
      %v2229 = vadd.f32 0.0, %v2228
      %2230 = vmatprep.mubr.bf16.mxu0 0
      %2231 = vmatmul.mubr.bf16.gmra.mxu0 %v2186
      %v2232 = vpop.f32.mrf.mxu0
      %v2233 = vadd.f32 0.0, %v2232
      %v2234 = vpop.f32.mrf.mxu0
      %v2235 = vadd.f32 0.0, %v2234
      %v2236 = vpop.f32.mrf.mxu0
      %v2237 = vadd.f32 0.0, %v2236
      %v2238 = vpop.f32.mrf.mxu0
      %v2239 = vadd.f32 0.0, %v2238
      %2240 = vdwg.mxu0
      %v2241 = vadd.f32 %v2139, %v2223
      %v2242 = vadd.f32 %v2140, %v2225
      %v2243 = vadd.f32 %v2141, %v2227
      %v2244 = vadd.f32 %v2142, %v2229
      %v2245 = vadd.f32 %v2143, %v2233
      %v2246 = vadd.f32 %v2144, %v2235
      %v2247 = vadd.f32 %v2145, %v2237
      %v2248 = vadd.f32 %v2146, %v2239
      %s2249 = scalar_lea.vmem %s2, 128
      %v2250 = vld [vmem:[%s2249] sm:$0xf]
      %v2251 = vld [vmem:[%s2249 + $0x4] sm:$0xf]
      %v2252 = vld [vmem:[%s2249 + $0x8] sm:$0xf]
      %v2253 = vld [vmem:[%s2249 + $0xc] sm:$0xf]
      %v2258 = vunpack.c.l.b16 %v2250
      %v2259 = vunpack.c.l.b16 %v2251
      %v2260 = vunpack.c.l.b16 %v2252
      %v2261 = vunpack.c.l.b16 %v2253
      %v2262 = vpack.c.b16 %v2259, %v2258
      %v2263 = vpack.c.b16 %v2261, %v2260
      %2264 = vrot.lane.b32.xlu0 %v1412, 111
      %v2265 = vpop.permute.xlu0 %2264
      %2266 = vrot.lane.b32.xlu0 %v1413, 111
      %v2267 = vpop.permute.xlu0 %2266
      %2268 = vrot.lane.b32.xlu0 %v1940, 111
      %v2269 = vpop.permute.xlu0 %2268
      %2270 = vrot.lane.b32.xlu0 %v1415, 111
      %v2271 = vpop.permute.xlu0 %2270
      %2272 = vrot.lane.b32.xlu0 %v1416, 111
      %v2273 = vpop.permute.xlu0 %2272
      %2274 = vrot.lane.b32.xlu0 %v1941, 111
      %v2275 = vpop.permute.xlu0 %2274
      %v2276 = vsel %vm1113, %v2265, %v2267
      %v2277 = vsel %vm1113, %v2267, %v2269
      %v2278 = vsel %vm1113, %v2271, %v2273
      %v2279 = vsel %vm1113, %v2273, %v2275
      %v2285 = vsel %vm1437, %v2262, 0
      %v2288 = vsel %vm1437, %v2263, 0
      %2290 = vmatprep.subr.bf16.mxu0 0
      %2291 = vmatpush1.bf16.msra.mxu0 0
      %2292 = vmatprep.subr.bf16.mxu0 0
      %2293 = vmatpush1.bf16.msra.mxu0 0
      %2294 = vmatprep.subr.bf16.mxu0 0
      %2295 = vmatpush1.bf16.msra.mxu0 0
      %2296 = vmatprep.subr.bf16.mxu0 0
      %2297 = vmatpush1.bf16.msra.mxu0 0
      %2298 = vmatprep.subr.bf16.mxu0 0
      %2299 = vmatpush1.bf16.msra.mxu0 0
      %2300 = vmatprep.subr.bf16.mxu0 0
      %2301 = vmatpush1.bf16.msra.mxu0 0
      %2302 = vmatprep.subr.bf16.mxu0 %v2279
      %2303 = vmatpush1.bf16.msra.mxu0 %v2278
      %2304 = vmatprep.subr.bf16.mxu0 %v2277
      %2305 = vmatpush1.bf16.msra.mxu0 %v2276
      %2306 = vmatprep.subr.bf16.mxu0 0
      %2307 = vmatpush2.bf16.msra.mxu0 0
      %2308 = vmatprep.subr.bf16.mxu0 0
      %2309 = vmatpush2.bf16.msra.mxu0 0
      %2310 = vmatprep.subr.bf16.mxu0 0
      %2311 = vmatpush2.bf16.msra.mxu0 0
      %2312 = vmatprep.subr.bf16.mxu0 0
      %2313 = vmatpush2.bf16.msra.mxu0 0
      %2314 = vmatprep.subr.bf16.mxu0 0
      %2315 = vmatpush2.bf16.msra.mxu0 0
      %2316 = vmatprep.subr.bf16.mxu0 0
      %2317 = vmatpush2.bf16.msra.mxu0 0
      %2318 = vmatprep.subr.bf16.mxu0 0
      %2319 = vmatpush2.bf16.msra.mxu0 0
      %2320 = vmatprep.subr.bf16.mxu0 0
      %2321 = vmatpush2.bf16.msra.mxu0 0
      %2322 = vmatprep.mubr.bf16.mxu0 0
      %2323 = vmatmul.mubr.bf16.gmra.mxu0 %v2285
      %v2324 = vpop.f32.mrf.mxu0
      %v2325 = vadd.f32 0.0, %v2324
      %v2326 = vpop.f32.mrf.mxu0
      %v2327 = vadd.f32 0.0, %v2326
      %v2328 = vpop.f32.mrf.mxu0
      %v2329 = vadd.f32 0.0, %v2328
      %v2330 = vpop.f32.mrf.mxu0
      %v2331 = vadd.f32 0.0, %v2330
      %2332 = vmatprep.mubr.bf16.mxu0 0
      %2333 = vmatmul.mubr.bf16.gmra.mxu0 %v2288
      %v2334 = vpop.f32.mrf.mxu0
      %v2335 = vadd.f32 0.0, %v2334
      %v2336 = vpop.f32.mrf.mxu0
      %v2337 = vadd.f32 0.0, %v2336
      %v2338 = vpop.f32.mrf.mxu0
      %v2339 = vadd.f32 0.0, %v2338
      %v2340 = vpop.f32.mrf.mxu0
      %v2341 = vadd.f32 0.0, %v2340
      %2342 = vdwg.mxu0
      %v2343 = vsel %vm573, %v2325, 0.0
      %v2344 = vsel %vm574, %v2327, 0.0
      %v2345 = vsel %vm573, %v2329, 0.0
      %v2346 = vsel %vm574, %v2331, 0.0
      %v2347 = vsel %vm573, %v2335, 0.0
      %v2348 = vsel %vm574, %v2337, 0.0
      %v2349 = vsel %vm573, %v2339, 0.0
      %v2350 = vsel %vm574, %v2341, 0.0
      %v2351 = vadd.f32 %v2241, %v2343
      %v2352 = vadd.f32 %v2242, %v2344
      %v2353 = vadd.f32 %v2243, %v2345
      %v2354 = vadd.f32 %v2244, %v2346
      %v2355 = vadd.f32 %v2245, %v2347
      %v2356 = vadd.f32 %v2246, %v2348
      %v2357 = vadd.f32 %v2247, %v2349
      %v2358 = vadd.f32 %v2248, %v2350
      %v2359 = vld [vmem:[%s4] sm:$0xff]
      %v2360 = vld [vmem:[%s4 + $0x8] sm:$0xff]
      %v2361 = vld [vmem:[%s4 + $0x10] sm:$0xff]
      %v2362 = vld [vmem:[%s4 + $0x18] sm:$0xff]
      %2364 = vset.pattern.permute.xlu0 0
      %2365 = vperm.xlu0 %2364, %v2359
      %v2366 = vpop.permute.xlu0 %2365
      %2369 = vset.pattern.permute.xlu0 0
      %2370 = vperm.xlu0 %2369, %v2360
      %v2371 = vpop.permute.xlu0 %2370
      %2374 = vset.pattern.permute.xlu0 0
      %2375 = vperm.xlu0 %2374, %v2361
      %v2376 = vpop.permute.xlu0 %2375
      %2379 = vset.pattern.permute.xlu0 0
      %2380 = vperm.xlu0 %2379, %v2362
      %v2381 = vpop.permute.xlu0 %2380
      %v2383 = vadd.f32 %v2351, %v2366
      %v2384 = vadd.f32 %v2352, %v2366
      %v2385 = vadd.f32 %v2353, %v2371
      %v2386 = vadd.f32 %v2354, %v2371
      %v2387 = vadd.f32 %v2355, %v2376
      %v2388 = vadd.f32 %v2356, %v2376
      %v2389 = vadd.f32 %v2357, %v2381
      %v2390 = vadd.f32 %v2358, %v2381
      %vm2391 = vcmp.gt.f32.partialorder %v2383, 20.0
      %vm2392 = vcmp.gt.f32.partialorder %v2384, 20.0
      %vm2393 = vcmp.gt.f32.partialorder %v2385, 20.0
      %vm2394 = vcmp.gt.f32.partialorder %v2386, 20.0
      %vm2395 = vcmp.gt.f32.partialorder %v2387, 20.0
      %vm2396 = vcmp.gt.f32.partialorder %v2388, 20.0
      %vm2397 = vcmp.gt.f32.partialorder %v2389, 20.0
      %vm2398 = vcmp.gt.f32.partialorder %v2390, 20.0
      %v2399 = vmul.f32 %v2383, 1.442695
      %v2400 = vpow.pop %v2399
      %v2401 = vmul.f32 %v2384, 1.442695
      %v2402 = vpow.pop %v2401
      %v2403 = vmul.f32 %v2385, 1.442695
      %v2404 = vpow.pop %v2403
      %v2405 = vmul.f32 %v2386, 1.442695
      %v2406 = vpow.pop %v2405
      %v2407 = vmul.f32 %v2387, 1.442695
      %v2408 = vpow.pop %v2407
      %v2409 = vmul.f32 %v2388, 1.442695
      %v2410 = vpow.pop %v2409
      %v2411 = vmul.f32 %v2389, 1.442695
      %v2412 = vpow.pop %v2411
      %v2413 = vmul.f32 %v2390, 1.442695
      %v2414 = vpow.pop %v2413
      %v2415 = vadd.f32 %v2400, 1.0
      %v2416 = vlog2.pop %v2415
      %v2417 = vmul.f32 %v2416, 0.6931472
      %v2418 = vmul.f32 -0.5, %v2400
      %v2419 = vadd.f32 %v2418, 1.0
      %v2420 = vmul.f32 %v2419, %v2400
      %v2421 = vand.u32 2147483647, %v2400
      %vm2422 = vcmp.lt.f32.partialorder %v2421, 0.0004427343
      %v2423 = vsel %vm2422, %v2420, %v2417
      %v2424 = vadd.f32 %v2402, 1.0
      %v2425 = vlog2.pop %v2424
      %v2426 = vmul.f32 %v2425, 0.6931472
      %v2427 = vmul.f32 -0.5, %v2402
      %v2428 = vadd.f32 %v2427, 1.0
      %v2429 = vmul.f32 %v2428, %v2402
      %v2430 = vand.u32 2147483647, %v2402
      %vm2431 = vcmp.lt.f32.partialorder %v2430, 0.0004427343
      %v2432 = vsel %vm2431, %v2429, %v2426
      %v2433 = vadd.f32 %v2404, 1.0
      %v2434 = vlog2.pop %v2433
      %v2435 = vmul.f32 %v2434, 0.6931472
      %v2436 = vmul.f32 -0.5, %v2404
      %v2437 = vadd.f32 %v2436, 1.0
      %v2438 = vmul.f32 %v2437, %v2404
      %v2439 = vand.u32 2147483647, %v2404
      %vm2440 = vcmp.lt.f32.partialorder %v2439, 0.0004427343
      %v2441 = vsel %vm2440, %v2438, %v2435
      %v2442 = vadd.f32 %v2406, 1.0
      %v2443 = vlog2.pop %v2442
      %v2444 = vmul.f32 %v2443, 0.6931472
      %v2445 = vmul.f32 -0.5, %v2406
      %v2446 = vadd.f32 %v2445, 1.0
      %v2447 = vmul.f32 %v2446, %v2406
      %v2448 = vand.u32 2147483647, %v2406
      %vm2449 = vcmp.lt.f32.partialorder %v2448, 0.0004427343
      %v2450 = vsel %vm2449, %v2447, %v2444
      %v2451 = vadd.f32 %v2408, 1.0
      %v2452 = vlog2.pop %v2451
      %v2453 = vmul.f32 %v2452, 0.6931472
      %v2454 = vmul.f32 -0.5, %v2408
      %v2455 = vadd.f32 %v2454, 1.0
      %v2456 = vmul.f32 %v2455, %v2408
      %v2457 = vand.u32 2147483647, %v2408
      %vm2458 = vcmp.lt.f32.partialorder %v2457, 0.0004427343
      %v2459 = vsel %vm2458, %v2456, %v2453
      %v2460 = vadd.f32 %v2410, 1.0
      %v2461 = vlog2.pop %v2460
      %v2462 = vmul.f32 %v2461, 0.6931472
      %v2463 = vmul.f32 -0.5, %v2410
      %v2464 = vadd.f32 %v2463, 1.0
      %v2465 = vmul.f32 %v2464, %v2410
      %v2466 = vand.u32 2147483647, %v2410
      %vm2467 = vcmp.lt.f32.partialorder %v2466, 0.0004427343
      %v2468 = vsel %vm2467, %v2465, %v2462
      %v2469 = vadd.f32 %v2412, 1.0
      %v2470 = vlog2.pop %v2469
      %v2471 = vmul.f32 %v2470, 0.6931472
      %v2472 = vmul.f32 -0.5, %v2412
      %v2473 = vadd.f32 %v2472, 1.0
      %v2474 = vmul.f32 %v2473, %v2412
      %v2475 = vand.u32 2147483647, %v2412
      %vm2476 = vcmp.lt.f32.partialorder %v2475, 0.0004427343
      %v2477 = vsel %vm2476, %v2474, %v2471
      %v2478 = vadd.f32 %v2414, 1.0
      %v2479 = vlog2.pop %v2478
      %v2480 = vmul.f32 %v2479, 0.6931472
      %v2481 = vmul.f32 -0.5, %v2414
      %v2482 = vadd.f32 %v2481, 1.0
      %v2483 = vmul.f32 %v2482, %v2414
      %v2484 = vand.u32 2147483647, %v2414
      %vm2485 = vcmp.lt.f32.partialorder %v2484, 0.0004427343
      %v2486 = vsel %vm2485, %v2483, %v2480
      %v2487 = vsel %vm2391, %v2383, %v2423
      %v2488 = vsel %vm2392, %v2384, %v2432
      %v2489 = vsel %vm2393, %v2385, %v2441
      %v2490 = vsel %vm2394, %v2386, %v2450
      %v2491 = vsel %vm2395, %v2387, %v2459
      %v2492 = vsel %vm2396, %v2388, %v2468
      %v2493 = vsel %vm2397, %v2389, %v2477
      %v2494 = vsel %vm2398, %v2390, %v2486
      %2495 = vst [vmem:[%s224] sm:$0xff] %v2487
      %2496 = vst [vmem:[%s224 + $0x8] sm:$0xff] %v2488
      %2497 = vst [vmem:[%s224 + $0x10] sm:$0xff] %v2489
      %2498 = vst [vmem:[%s224 + $0x18] sm:$0xff] %v2490
      %2499 = vst [vmem:[%s224 + $0x20] sm:$0xff] %v2491
      %2500 = vst [vmem:[%s224 + $0x28] sm:$0xff] %v2492
      %2501 = vst [vmem:[%s224 + $0x30] sm:$0xff] %v2493
      %2502 = vst [vmem:[%s224 + $0x38] sm:$0xff] %v2494
      %p2503 = scmp.lt.s32.totalorder %s16, 1
      %s2504 = scalar_select %p2503, %s16, 1
      %s2505 = smul.addr %s2504, 8
      %s2506 = smul.addr %s2505, 8
      %s2507 = scalar_lea.vmem %s5, %s2506
      // Predicated region
      $region41: #{regularized_model_idr_forward.1} parent=39 // pred_check
        %p2508 = pneg %p144
      $region42: #{regularized_model_idr_forward.1} parent=39 // pred_check_branch
        %2510 = sbr.rel (%p2508) target = $region44
      $region43: #{regularized_model_idr_forward.1} parent=39 // pred_region
        _
      $region44: #{regularized_model_idr_forward.1} parent=39 // pred_fallthru
        _
    $region40: #{regularized_model_idr_forward.1} parent=5 // pred_fallthru
      _
    %p2511 = scmp.le.s32.totalorder 2, %s11
    // Predicated region
    $region45: #{regularized_model_idr_forward.1} parent=5 // pred_check
      %p2512 = pneg %p2511
    $region46: #{regularized_model_idr_forward.1} parent=5 // pred_check_branch
      %2514 = sbr.rel (%p2512) target = $region48
    $region47: #{regularized_model_idr_forward.1} parent=5 // pred_region
      %s2515 = ssub.s32 %s11, 2
      // Predicated region
      $region49: #{regularized_model_idr_forward.1} parent=47 // pred_check
        %p2516 = pneg %p150
      $region50: #{regularized_model_idr_forward.1} parent=47 // pred_check_branch
        %2518 = sbr.rel (%p2516) target = $region52
      $region51: #{regularized_model_idr_forward.1} parent=47 // pred_region
        %p2519 = scmp.lt.s32.totalorder %s17, 1
        %s2520 = scalar_select %p2519, %s17, 1
        %s2521 = smul.addr %s2520, 8
        %s2522 = smul.addr %s2521, 8
        %s2523 = scalar_lea.vmem %s5, %s2522
      $region52: #{regularized_model_idr_forward.1} parent=47 // pred_fallthru
        _
    $region48: #{regularized_model_idr_forward.1} parent=5 // pred_fallthru
      _
  $region6: #{regularized_model_idr_forward.1} parent=0 // loop_footer
    %s15 = sadd.s32 1, %s11
  $region7: #{regularized_model_idr_forward.1} parent=0 // loop_footer_branch
    %10 = sbr.rel target = $region3
  $region8: #{regularized_model_idr_forward.1} parent=0 // loop_exit
    _

</llo_original>
